<compile_context>
chip_gen: v7x
topology: tpu7x:2x2x1
jax: 0.10.0
libtpu: 0.0.40
codegen_flags: <defaults>
</compile_context>

<pallas_src>
import jax
import jax.numpy as jnp
from jax.experimental import pallas as pl
from jax.experimental.pallas import tpu as pltpu


def _mlp_kernel(x_ref,                    # (2, TM)   input tile, batch on lanes
                w1_ref, b1_ref,           # (20, 2), (20, 1)
                w2_ref, b2_ref,           # (20, 20), (20, 1)
                w3_ref, b3_ref,           # (20, 20), (20, 1)
                w4_ref, b4_ref,           # (1, 20),  (1, 1)
                o_ref):                   # (1, TM)   output tile, batch on lanes
    """Whole forward pass for one batch tile, entirely in VMEM, lane-dense."""
    x = x_ref[...]                                                     # (2, TM)
    w1 = w1_ref[...]                                                   # (20, 2)

    # Layer 1 (K = 2): two VPU broadcast-FMAs — skips an MXU push/pop round trip.
    h = jnp.tanh(w1[:, 0:1] * x[0:1, :] + w1[:, 1:2] * x[1:2, :] + b1_ref[...])   # (20, TM)

    h = jnp.tanh(jnp.dot(w2_ref[...], h,
                         preferred_element_type=jnp.float32) + b2_ref[...])       # (20, TM)
    h = jnp.tanh(jnp.dot(w3_ref[...], h,
                         preferred_element_type=jnp.float32) + b3_ref[...])       # (20, TM)
    z = jnp.dot(w4_ref[...], h,
                preferred_element_type=jnp.float32) + b4_ref[...]                 # (1, TM)

    # Exact sigmoid via a single EUP op: sigmoid(z) = 0.5 * (tanh(z/2) + 1).
    o_ref[...] = (0.5 * jnp.tanh(0.5 * z) + 0.5).astype(o_ref.dtype)


def _pallas_forward_blocked(x_blk, params):
    """Core Pallas call.

    x_blk: (2, n_tiles, tile_m) float32, feature-major, batch dense on the trailing
    two dims (no sublane/lane padding in HBM).  Returns (n_tiles, tile_m) float32.
    """
    _, n_tiles, tile_m = x_blk.shape

    # Transpose weights to (out, in) / biases to (out, 1) so the kernel computes
    # W^T @ x + b with the batch dimension on lanes.  They are tiny; replicate the
    # full arrays to every grid step.
    w1T, b1T = params["w1"].T, params["b1"].T   # (20, 2),  (20, 1)
    w2T, b2T = params["w2"].T, params["b2"].T   # (20, 20), (20, 1)
    w3T, b3T = params["w3"].T, params["b3"].T   # (20, 20), (20, 1)
    w4T, b4T = params["w4"].T, params["b4"].T   # (1, 20),  (1, 1)

    full = lambda a: pl.BlockSpec(a.shape, lambda i: (0, 0))

    return pl.pallas_call(
        _mlp_kernel,
        out_shape=jax.ShapeDtypeStruct((n_tiles, tile_m), jnp.float32),
        grid_spec=pltpu.PrefetchScalarGridSpec(
            num_scalar_prefetch=0,
            grid=(n_tiles,),
            in_specs=[
                # Dense input stream: block (2, 1, tile_m); the size-1 tile axis is
                # squeezed so the kernel sees (2, tile_m).
                pl.BlockSpec((2, None, tile_m), lambda i: (0, i, 0)),
                full(w1T), full(b1T),
                full(w2T), full(b2T),
                full(w3T), full(b3T),
                full(w4T), full(b4T),
            ],
            # Dense, lane-wide output rows: one (1, tile_m) slab per grid step.
            out_specs=pl.BlockSpec((1, tile_m), lambda i: (i, 0)),
        ),
        compiler_params=pltpu.CompilerParams(
            dimension_semantics=("parallel",),   # independent batch tiles
        ),
    )(x_blk, w1T, b1T, w2T, b2T, w3T, b3T, w4T, b4T)


def func_i_forward_feature_major(x_fm, params, *, tile_m=2048):
    """Fast path: x_fm is (2, N) feature-major float32.  Returns flat (N,) float32.

    Callers that can hold their batch feature-major avoid any transpose pass; the
    only wrapper ops are a (possible) pad to a tile multiple and contiguous reshapes.
    """
    F, N = x_fm.shape
    assert F == 2, "funcI expects 2 input features"
    assert tile_m % 128 == 0, "tile_m must be a multiple of 128 (lane width)"

    n_tiles = pl.cdiv(N, tile_m)
    Npad = n_tiles * tile_m
    if Npad != N:
        # Zero padding: padded columns produce well-defined (finite) outputs that
        # are sliced off below; nothing downstream reduces over them.
        x_fm = jnp.pad(x_fm, ((0, 0), (0, Npad - N)))

    x_blk = x_fm.reshape(2, n_tiles, tile_m)          # contiguous regrouping
    out = _pallas_forward_blocked(x_blk, params)      # (n_tiles, tile_m)
    return out.reshape(Npad)[:N]


def func_i_forward(t, params, *, tile_m=2048):
    """Module-compatible entry: t (N, 2) float32 -> (N, 1) float32 (like funcI.forward)."""
    N, F = t.shape
    assert F == 2, "funcI expects 2 input features"
    # Single relayout pass (transpose); pad/reshape happen in the fast path.
    flat = func_i_forward_feature_major(t.T, params, tile_m=tile_m)
    return flat.reshape(N, 1)


def init_params(key):
    """PyTorch nn.Linear default init: U(-1/sqrt(fan_in), 1/sqrt(fan_in))."""
    def linear(key, fan_in, fan_out):
        kw, kb = jax.random.split(key)
        bound = 1.0 / jnp.sqrt(jnp.float32(fan_in))
        w = jax.random.uniform(kw, (fan_in, fan_out), jnp.float32, -bound, bound)
        b = jax.random.uniform(kb, (1, fan_out), jnp.float32, -bound, bound)
        return w, b

    k1, k2, k3, k4 = jax.random.split(key, 4)
    w1, b1 = linear(k1, 2, 20)
    w2, b2 = linear(k2, 20, 20)
    w3, b3 = linear(k3, 20, 20)
    w4, b4 = linear(k4, 20, 1)
    return {"w1": w1, "b1": b1, "w2": w2, "b2": b2,
            "w3": w3, "b3": b3, "w4": w4, "b4": b4}


def reference_forward(t, p):
    """Pure-JAX reference for correctness checking."""
    h = jnp.tanh(t @ p["w1"] + p["b1"])
    h = jnp.tanh(h @ p["w2"] + p["b2"])
    h = jnp.tanh(h @ p["w3"] + p["b3"])
    return jax.nn.sigmoid(h @ p["w4"] + p["b4"])


if __name__ == "__main__":
    key = jax.random.PRNGKey(0)
    k_t, k_p = jax.random.split(key)

    # Deterministic input: 1000 rows (not a multiple of tile_m -> exercises padding),
    # 2 features each (what Linear(2, 20) implies).
    N = 1000
    t = jax.random.normal(k_t, (N, 2), dtype=jnp.float32)
    params = init_params(k_p)

    ref = reference_forward(t, params)

    # 1) Module-compatible entry, default tile (single grid step, padded).
    out = jax.block_until_ready(func_i_forward(t, params))
    assert out.shape == (N, 1)
    assert jnp.allclose(out, ref, atol=1e-4, rtol=1e-4), "mismatch (default tile)"

    # 2) Multi-tile grid (smaller tile) to exercise several grid steps + padding.
    out_small = jax.block_until_ready(func_i_forward(t, params, tile_m=256))
    assert jnp.allclose(out_small, ref, atol=1e-4, rtol=1e-4), "mismatch (tile_m=256)"

    # 3) Feature-major fast path with flat (N,) output.
    flat = jax.block_until_ready(
        func_i_forward_feature_major(t.T, params, tile_m=512))
    assert flat.shape == (N,)
    assert jnp.allclose(flat, ref.reshape(-1), atol=1e-4, rtol=1e-4), \
        "mismatch (feature-major)"

    print("KERNEL_OK")
</pallas_src>

<mosaic_0001>
module attributes {stable_mosaic.version = 11 : i64} {
  func.func @_mlp_kernel(%arg0: i32, %arg1: memref<2x1x2048xf32, #tpu.memory_space<vmem>>, %arg2: memref<20x2xf32, #tpu.memory_space<vmem>>, %arg3: memref<20x1xf32, #tpu.memory_space<vmem>>, %arg4: memref<20x20xf32, #tpu.memory_space<vmem>>, %arg5: memref<20x1xf32, #tpu.memory_space<vmem>>, %arg6: memref<20x20xf32, #tpu.memory_space<vmem>>, %arg7: memref<20x1xf32, #tpu.memory_space<vmem>>, %arg8: memref<1x20xf32, #tpu.memory_space<vmem>>, %arg9: memref<1x1xf32, #tpu.memory_space<vmem>>, %arg10: memref<1x2048xf32, #tpu.memory_space<vmem>>) attributes {dimension_semantics = [#tpu.dimension_semantics<parallel>], iteration_bounds = array<i64: 1>, scalar_prefetch = 0 : i64, scratch_operands = 0 : i64, tpu.core_type = #tpu.core_type<tc>, window_params = [{transform_indices = @transform_0, window_bounds = array<i64: 2, 1, 2048>}, {pipeline_mode = #tpu.pipeline_mode<synchronous>, transform_indices = @transform_1, window_bounds = array<i64: 20, 2>}, {pipeline_mode = #tpu.pipeline_mode<synchronous>, transform_indices = @transform_2, window_bounds = array<i64: 20, 1>}, {pipeline_mode = #tpu.pipeline_mode<synchronous>, transform_indices = @transform_3, window_bounds = array<i64: 20, 20>}, {pipeline_mode = #tpu.pipeline_mode<synchronous>, transform_indices = @transform_4, window_bounds = array<i64: 20, 1>}, {pipeline_mode = #tpu.pipeline_mode<synchronous>, transform_indices = @transform_5, window_bounds = array<i64: 20, 20>}, {pipeline_mode = #tpu.pipeline_mode<synchronous>, transform_indices = @transform_6, window_bounds = array<i64: 20, 1>}, {pipeline_mode = #tpu.pipeline_mode<synchronous>, transform_indices = @transform_7, window_bounds = array<i64: 1, 20>}, {pipeline_mode = #tpu.pipeline_mode<synchronous>, transform_indices = @transform_8, window_bounds = array<i64: 1, 1>}, {transform_indices = @transform_9, window_bounds = array<i64: 1, 2048>}]} {
    %c0 = arith.constant 0 : index
    %c0_0 = arith.constant 0 : index
    %c0_1 = arith.constant 0 : index
    %0 = vector.load %arg1[%c0, %c0_0, %c0_1] : memref<2x1x2048xf32, #tpu.memory_space<vmem>>, vector<2x1x2048xf32>
    %1 = vector.shape_cast %0 : vector<2x1x2048xf32> to vector<2x2048xf32>
    %c0_2 = arith.constant 0 : index
    %c0_3 = arith.constant 0 : index
    %2 = vector.load %arg2[%c0_2, %c0_3] : memref<20x2xf32, #tpu.memory_space<vmem>>, vector<20x2xf32>
    %3 = vector.extract_strided_slice %2 {offsets = [0, 0], sizes = [20, 1], strides = [1, 1]} : vector<20x2xf32> to vector<20x1xf32>
    %4 = vector.extract_strided_slice %1 {offsets = [0, 0], sizes = [1, 2048], strides = [1, 1]} : vector<2x2048xf32> to vector<1x2048xf32>
    %5 = vector.broadcast %3 : vector<20x1xf32> to vector<20x2048xf32>
    %6 = vector.broadcast %4 : vector<1x2048xf32> to vector<20x2048xf32>
    %7 = arith.mulf %5, %6 : vector<20x2048xf32>
    %8 = vector.extract_strided_slice %2 {offsets = [0, 1], sizes = [20, 1], strides = [1, 1]} : vector<20x2xf32> to vector<20x1xf32>
    %9 = vector.extract_strided_slice %1 {offsets = [1, 0], sizes = [1, 2048], strides = [1, 1]} : vector<2x2048xf32> to vector<1x2048xf32>
    %10 = vector.broadcast %8 : vector<20x1xf32> to vector<20x2048xf32>
    %11 = vector.broadcast %9 : vector<1x2048xf32> to vector<20x2048xf32>
    %12 = arith.mulf %10, %11 : vector<20x2048xf32>
    %13 = arith.addf %7, %12 : vector<20x2048xf32>
    %c0_4 = arith.constant 0 : index
    %c0_5 = arith.constant 0 : index
    %14 = vector.load %arg3[%c0_4, %c0_5] : memref<20x1xf32, #tpu.memory_space<vmem>>, vector<20x1xf32>
    %15 = vector.broadcast %14 : vector<20x1xf32> to vector<20x2048xf32>
    %16 = arith.addf %13, %15 : vector<20x2048xf32>
    %17 = math.tanh %16 : vector<20x2048xf32>
    %c0_6 = arith.constant 0 : index
    %c0_7 = arith.constant 0 : index
    %18 = vector.load %arg4[%c0_6, %c0_7] : memref<20x20xf32, #tpu.memory_space<vmem>>, vector<20x20xf32>
    %cst = arith.constant dense<0.000000e+00> : vector<20x2048xf32>
    %19 = tpu.matmul %18, %17, %cst {dimension_numbers = #tpu.dot_dimension_numbers<[1], [0], [0], [1], [0, 0, 1, 1], [], []>} : vector<20x20xf32>, vector<20x2048xf32>, vector<20x2048xf32> -> vector<20x2048xf32>
    %c0_8 = arith.constant 0 : index
    %c0_9 = arith.constant 0 : index
    %20 = vector.load %arg5[%c0_8, %c0_9] : memref<20x1xf32, #tpu.memory_space<vmem>>, vector<20x1xf32>
    %21 = vector.broadcast %20 : vector<20x1xf32> to vector<20x2048xf32>
    %22 = arith.addf %19, %21 : vector<20x2048xf32>
    %23 = math.tanh %22 : vector<20x2048xf32>
    %c0_10 = arith.constant 0 : index
    %c0_11 = arith.constant 0 : index
    %24 = vector.load %arg6[%c0_10, %c0_11] : memref<20x20xf32, #tpu.memory_space<vmem>>, vector<20x20xf32>
    %cst_12 = arith.constant dense<0.000000e+00> : vector<20x2048xf32>
    %25 = tpu.matmul %24, %23, %cst_12 {dimension_numbers = #tpu.dot_dimension_numbers<[1], [0], [0], [1], [0, 0, 1, 1], [], []>} : vector<20x20xf32>, vector<20x2048xf32>, vector<20x2048xf32> -> vector<20x2048xf32>
    %c0_13 = arith.constant 0 : index
    %c0_14 = arith.constant 0 : index
    %26 = vector.load %arg7[%c0_13, %c0_14] : memref<20x1xf32, #tpu.memory_space<vmem>>, vector<20x1xf32>
    %27 = vector.broadcast %26 : vector<20x1xf32> to vector<20x2048xf32>
    %28 = arith.addf %25, %27 : vector<20x2048xf32>
    %29 = math.tanh %28 : vector<20x2048xf32>
    %c0_15 = arith.constant 0 : index
    %c0_16 = arith.constant 0 : index
    %30 = vector.load %arg8[%c0_15, %c0_16] : memref<1x20xf32, #tpu.memory_space<vmem>>, vector<1x20xf32>
    %cst_17 = arith.constant dense<0.000000e+00> : vector<1x2048xf32>
    %31 = tpu.matmul %30, %29, %cst_17 {dimension_numbers = #tpu.dot_dimension_numbers<[1], [0], [0], [1], [0, 0, 1, 1], [], []>} : vector<1x20xf32>, vector<20x2048xf32>, vector<1x2048xf32> -> vector<1x2048xf32>
    %c0_18 = arith.constant 0 : index
    %c0_19 = arith.constant 0 : index
    %32 = vector.load %arg9[%c0_18, %c0_19] : memref<1x1xf32, #tpu.memory_space<vmem>>, vector<1x1xf32>
    %33 = vector.broadcast %32 : vector<1x1xf32> to vector<1x2048xf32>
    %34 = arith.addf %31, %33 : vector<1x2048xf32>
    %cst_20 = arith.constant 5.000000e-01 : f32
    %35 = vector.broadcast %cst_20 : f32 to vector<1x2048xf32>
    %36 = arith.mulf %35, %34 : vector<1x2048xf32>
    %37 = math.tanh %36 : vector<1x2048xf32>
    %cst_21 = arith.constant 5.000000e-01 : f32
    %38 = vector.broadcast %cst_21 : f32 to vector<1x2048xf32>
    %39 = arith.mulf %38, %37 : vector<1x2048xf32>
    %cst_22 = arith.constant 5.000000e-01 : f32
    %40 = vector.broadcast %cst_22 : f32 to vector<1x2048xf32>
    %41 = arith.addf %39, %40 : vector<1x2048xf32>
    %c0_23 = arith.constant 0 : index
    %c0_24 = arith.constant 0 : index
    %42 = vector.load %arg10[%c0_23, %c0_24] : memref<1x2048xf32, #tpu.memory_space<vmem>>, vector<1x2048xf32>
    tpu.vector_store %arg10[%c0_23, %c0_24], %41 {strides = array<i32>} : memref<1x2048xf32, #tpu.memory_space<vmem>>, vector<1x2048xf32>,
    return
  }
  func.func @transform_0(%arg0: i32) -> (i32, i32, i32) {
    %c0_i32 = arith.constant 0 : i32
    %c0_i32_0 = arith.constant 0 : i32
    %c0_i32_1 = arith.constant 0 : i32
    return %c0_i32, %arg0, %c0_i32_0 : i32, i32, i32
  }
  func.func @transform_1(%arg0: i32) -> (i32, i32) {
    %c0_i32 = arith.constant 0 : i32
    %c0_i32_0 = arith.constant 0 : i32
    %c0_i32_1 = arith.constant 0 : i32
    return %c0_i32, %c0_i32_0 : i32, i32
  }
  func.func @transform_2(%arg0: i32) -> (i32, i32) {
    %c0_i32 = arith.constant 0 : i32
    %c0_i32_0 = arith.constant 0 : i32
    %c0_i32_1 = arith.constant 0 : i32
    return %c0_i32, %c0_i32_0 : i32, i32
  }
  func.func @transform_3(%arg0: i32) -> (i32, i32) {
    %c0_i32 = arith.constant 0 : i32
    %c0_i32_0 = arith.constant 0 : i32
    %c0_i32_1 = arith.constant 0 : i32
    return %c0_i32, %c0_i32_0 : i32, i32
  }
  func.func @transform_4(%arg0: i32) -> (i32, i32) {
    %c0_i32 = arith.constant 0 : i32
    %c0_i32_0 = arith.constant 0 : i32
    %c0_i32_1 = arith.constant 0 : i32
    return %c0_i32, %c0_i32_0 : i32, i32
  }
  func.func @transform_5(%arg0: i32) -> (i32, i32) {
    %c0_i32 = arith.constant 0 : i32
    %c0_i32_0 = arith.constant 0 : i32
    %c0_i32_1 = arith.constant 0 : i32
    return %c0_i32, %c0_i32_0 : i32, i32
  }
  func.func @transform_6(%arg0: i32) -> (i32, i32) {
    %c0_i32 = arith.constant 0 : i32
    %c0_i32_0 = arith.constant 0 : i32
    %c0_i32_1 = arith.constant 0 : i32
    return %c0_i32, %c0_i32_0 : i32, i32
  }
  func.func @transform_7(%arg0: i32) -> (i32, i32) {
    %c0_i32 = arith.constant 0 : i32
    %c0_i32_0 = arith.constant 0 : i32
    %c0_i32_1 = arith.constant 0 : i32
    return %c0_i32, %c0_i32_0 : i32, i32
  }
  func.func @transform_8(%arg0: i32) -> (i32, i32) {
    %c0_i32 = arith.constant 0 : i32
    %c0_i32_0 = arith.constant 0 : i32
    %c0_i32_1 = arith.constant 0 : i32
    return %c0_i32, %c0_i32_0 : i32, i32
  }
  func.func @transform_9(%arg0: i32) -> (i32, i32) {
    %c0_i32 = arith.constant 0 : i32
    %c0_i32_0 = arith.constant 0 : i32
    return %arg0, %c0_i32 : i32, i32
  }
}

</mosaic_0001>

<llo_original>
// kernel: tpu_custom_call.1
$region0: #{tpu_custom_call.1}
  #allocation0 [shape = 'u32[]', space=smem, size = 0x4, offset = 0x4, fixed_abs, tag = 'smem constant byte address 0x4 - core index']
  #allocation1 [shape = 'u32[144,128]{1,0:T(1,128)}', space=vmem, size = 0x12000, scoped, tag = 'internal scratch']
  #allocation2 [shape = 'f32[1,1]{1,0:T(1,128)S(1)}', space=vmem, size = 0x200, scoped, tag = 'scoped memory for tpu_custom_call.1']
  %s0 = inlined_call_operand.vmem [shape: f32[2,1,2048], index: 0, kind: input, shape index: {}]
  %s1 = inlined_call_operand.vmem [shape: f32[20,2], index: 1, kind: input, shape index: {}]
  %s2 = inlined_call_operand.vmem [shape: f32[20,1], index: 2, kind: input, shape index: {}]
  %s3 = inlined_call_operand.vmem [shape: f32[20,20], index: 3, kind: input, shape index: {}]
  %s4 = inlined_call_operand.vmem [shape: f32[20,1], index: 4, kind: input, shape index: {}]
  %s5 = inlined_call_operand.vmem [shape: f32[20,20], index: 5, kind: input, shape index: {}]
  %s6 = inlined_call_operand.vmem [shape: f32[20,1], index: 6, kind: input, shape index: {}]
  %s7 = inlined_call_operand.vmem [shape: f32[1,20], index: 7, kind: input, shape index: {}]
  %s8 = inlined_call_operand.<no memory space> [shape: f32[1,1], index: 8, kind: input, shape index: {}]
  %s9 = inlined_call_operand.hbm [shape: f32[1,2048], index: 9, kind: output, shape index: {}]
  %s10 = sld [smem:[#allocation0]]
  $region46: #{tpu_custom_call.1} parent=0
    _
  %s12 = ssub.s32 1, %s10
  %s13 = scalar_select 0, %s12, %s10
  %v14 = vstv %s8
  %15 = vst [vmem:[#allocation2] sm:$0x1] %v14
  $region1: #{tpu_custom_call.1} parent=0
    #allocation3 [shape = 'u8[8192]{0}', space=vmem, size = 0x2000, scoped, tag = 'output window, operand 0, single buffered']
    #allocation4 [shape = 's32[1]{0}', space=sflag, size = 0x4, scoped, tag = 'scoped memory for tpu_custom_call.1']
    %16 = vsyncpa [#allocation4], 0
    // Predicated region
    $region2: #{tpu_custom_call.1} parent=1 // pred_check
      _
    $region3: #{tpu_custom_call.1} parent=1 // pred_check_branch
      %18 = sbr.rel (0) target = $region5
    $region4: #{tpu_custom_call.1} parent=1 // pred_region
      _
    $region5: #{tpu_custom_call.1} parent=1 // pred_fallthru
      _
    // Predicated region
    $region6: #{tpu_custom_call.1} parent=1 // pred_check
      _
    $region7: #{tpu_custom_call.1} parent=1 // pred_check_branch
      %20 = sbr.rel (0) target = $region9
    $region8: #{tpu_custom_call.1} parent=1 // pred_region
      _
    $region9: #{tpu_custom_call.1} parent=1 // pred_fallthru
      _
    // Predicated region
    $region10: #{tpu_custom_call.1} parent=1 // pred_check
      _
    $region11: #{tpu_custom_call.1} parent=1 // pred_check_branch
      %22 = sbr.rel (0) target = $region13
    $region12: #{tpu_custom_call.1} parent=1 // pred_region
      _
    $region13: #{tpu_custom_call.1} parent=1 // pred_fallthru
      _
    // Predicated region
    $region14: #{tpu_custom_call.1} parent=1 // pred_check
      _
    $region15: #{tpu_custom_call.1} parent=1 // pred_check_branch
      %24 = sbr.rel (0) target = $region17
    $region16: #{tpu_custom_call.1} parent=1 // pred_region
      _
    $region17: #{tpu_custom_call.1} parent=1 // pred_fallthru
      _
    // Predicated region
    $region18: #{tpu_custom_call.1} parent=1 // pred_check
      _
    $region19: #{tpu_custom_call.1} parent=1 // pred_check_branch
      %26 = sbr.rel (0) target = $region21
    $region20: #{tpu_custom_call.1} parent=1 // pred_region
      _
    $region21: #{tpu_custom_call.1} parent=1 // pred_fallthru
      _
    // Predicated region
    $region22: #{tpu_custom_call.1} parent=1 // pred_check
      _
    $region23: #{tpu_custom_call.1} parent=1 // pred_check_branch
      %28 = sbr.rel (0) target = $region25
    $region24: #{tpu_custom_call.1} parent=1 // pred_region
      _
    $region25: #{tpu_custom_call.1} parent=1 // pred_fallthru
      _
    // Predicated region
    $region26: #{tpu_custom_call.1} parent=1 // pred_check
      _
    $region27: #{tpu_custom_call.1} parent=1 // pred_check_branch
      %30 = sbr.rel (0) target = $region29
    $region28: #{tpu_custom_call.1} parent=1 // pred_region
      _
    $region29: #{tpu_custom_call.1} parent=1 // pred_fallthru
      _
    // Predicated region
    $region30: #{tpu_custom_call.1} parent=1 // pred_check
      _
    $region31: #{tpu_custom_call.1} parent=1 // pred_check_branch
      %32 = sbr.rel (0) target = $region33
    $region32: #{tpu_custom_call.1} parent=1 // pred_region
      _
    $region33: #{tpu_custom_call.1} parent=1 // pred_fallthru
      _
    // Predicated region
    $region34: #{tpu_custom_call.1} parent=1 // pred_check
      _
    $region35: #{tpu_custom_call.1} parent=1 // pred_check_branch
      %34 = sbr.rel (0) target = $region37
    $region36: #{tpu_custom_call.1} parent=1 // pred_region
      _
    $region37: #{tpu_custom_call.1} parent=1 // pred_fallthru
      _
    %v35 = vld [vmem:[%s0] sm:$0xff]
    %v36 = vld [vmem:[%s0 + $0x8] sm:$0xff]
    %v37 = vld [vmem:[%s0 + $0x10] sm:$0xff]
    %v38 = vld [vmem:[%s0 + $0x18] sm:$0xff]
    %v39 = vld [vmem:[%s1] sm:$0xff]
    %v40 = vld [vmem:[%s1 + $0x8] sm:$0xff]
    %v41 = vld [vmem:[%s1 + $0x10] sm:$0xf]
    %43 = vset.pattern.permute.xlu0 0
    %44 = vperm.xlu0 %43, %v39
    %v45 = vpop.permute.xlu0 %44
    %48 = vset.pattern.permute.xlu0 0
    %49 = vperm.xlu0 %48, %v40
    %v50 = vpop.permute.xlu0 %49
    %53 = vset.pattern.permute.xlu0 0
    %54 = vperm.xlu0 %53, %v41
    %v55 = vpop.permute.xlu0 %54
    %v59 = vlaneseq
    %v60 = vshrl.u32 %v59, 7
    %v61 = vsub.s32 0, %v60
    %v62 = vrot.slane %v35, %v61
    %v63 = vlaneseq
    %v64 = vshrl.u32 %v63, 7
    %v65 = vsub.s32 1, %v64
    %v66 = vrot.slane %v35, %v65
    %v67 = vlaneseq
    %v68 = vshrl.u32 %v67, 7
    %v69 = vsub.s32 2, %v68
    %v70 = vrot.slane %v35, %v69
    %v71 = vlaneseq
    %v72 = vshrl.u32 %v71, 7
    %v73 = vsub.s32 3, %v72
    %v74 = vrot.slane %v35, %v73
    %v75 = vlaneseq
    %v76 = vshrl.u32 %v75, 7
    %v77 = vsub.s32 4, %v76
    %v78 = vrot.slane %v35, %v77
    %v79 = vlaneseq
    %v80 = vshrl.u32 %v79, 7
    %v81 = vsub.s32 5, %v80
    %v82 = vrot.slane %v35, %v81
    %v83 = vlaneseq
    %v84 = vshrl.u32 %v83, 7
    %v85 = vsub.s32 6, %v84
    %v86 = vrot.slane %v35, %v85
    %v87 = vlaneseq
    %v88 = vshrl.u32 %v87, 7
    %v89 = vsub.s32 7, %v88
    %v90 = vrot.slane %v35, %v89
    %v91 = vlaneseq
    %v92 = vshrl.u32 %v91, 7
    %v93 = vsub.s32 0, %v92
    %v94 = vrot.slane %v36, %v93
    %v95 = vlaneseq
    %v96 = vshrl.u32 %v95, 7
    %v97 = vsub.s32 1, %v96
    %v98 = vrot.slane %v36, %v97
    %v99 = vlaneseq
    %v100 = vshrl.u32 %v99, 7
    %v101 = vsub.s32 2, %v100
    %v102 = vrot.slane %v36, %v101
    %v103 = vlaneseq
    %v104 = vshrl.u32 %v103, 7
    %v105 = vsub.s32 3, %v104
    %v106 = vrot.slane %v36, %v105
    %v107 = vlaneseq
    %v108 = vshrl.u32 %v107, 7
    %v109 = vsub.s32 4, %v108
    %v110 = vrot.slane %v36, %v109
    %v111 = vlaneseq
    %v112 = vshrl.u32 %v111, 7
    %v113 = vsub.s32 5, %v112
    %v114 = vrot.slane %v36, %v113
    %v115 = vlaneseq
    %v116 = vshrl.u32 %v115, 7
    %v117 = vsub.s32 6, %v116
    %v118 = vrot.slane %v36, %v117
    %v119 = vlaneseq
    %v120 = vshrl.u32 %v119, 7
    %v121 = vsub.s32 7, %v120
    %v122 = vrot.slane %v36, %v121
    %v139 = vmul.f32 %v45, %v62
    %v140 = vmul.f32 %v45, %v66
    %v141 = vmul.f32 %v45, %v70
    %v142 = vmul.f32 %v45, %v74
    %v143 = vmul.f32 %v45, %v78
    %v144 = vmul.f32 %v45, %v82
    %v145 = vmul.f32 %v45, %v86
    %v146 = vmul.f32 %v45, %v90
    %v147 = vmul.f32 %v45, %v94
    %v148 = vmul.f32 %v45, %v98
    %v149 = vmul.f32 %v45, %v102
    %v150 = vmul.f32 %v45, %v106
    %v151 = vmul.f32 %v45, %v110
    %v152 = vmul.f32 %v45, %v114
    %v153 = vmul.f32 %v45, %v118
    %v154 = vmul.f32 %v45, %v122
    %v155 = vmul.f32 %v50, %v62
    %v156 = vmul.f32 %v50, %v66
    %v157 = vmul.f32 %v50, %v70
    %v158 = vmul.f32 %v50, %v74
    %v159 = vmul.f32 %v50, %v78
    %v160 = vmul.f32 %v50, %v82
    %v161 = vmul.f32 %v50, %v86
    %v162 = vmul.f32 %v50, %v90
    %v163 = vmul.f32 %v50, %v94
    %v164 = vmul.f32 %v50, %v98
    %v165 = vmul.f32 %v50, %v102
    %v166 = vmul.f32 %v50, %v106
    %v167 = vmul.f32 %v50, %v110
    %v168 = vmul.f32 %v50, %v114
    %v169 = vmul.f32 %v50, %v118
    %v170 = vmul.f32 %v50, %v122
    %v171 = vmul.f32 %v55, %v62
    %v172 = vmul.f32 %v55, %v66
    %v173 = vmul.f32 %v55, %v70
    %v174 = vmul.f32 %v55, %v74
    %v175 = vmul.f32 %v55, %v78
    %v176 = vmul.f32 %v55, %v82
    %v177 = vmul.f32 %v55, %v86
    %v178 = vmul.f32 %v55, %v90
    %v179 = vmul.f32 %v55, %v94
    %v180 = vmul.f32 %v55, %v98
    %v181 = vmul.f32 %v55, %v102
    %v182 = vmul.f32 %v55, %v106
    %v183 = vmul.f32 %v55, %v110
    %v184 = vmul.f32 %v55, %v114
    %v185 = vmul.f32 %v55, %v118
    %v186 = vmul.f32 %v55, %v122
    %187 = vset.pattern.permute.xlu0 1
    %188 = vperm.xlu0 %187, %v39
    %v189 = vpop.permute.xlu0 %188
    %191 = vset.pattern.permute.xlu0 1
    %192 = vperm.xlu0 %191, %v40
    %v193 = vpop.permute.xlu0 %192
    %195 = vset.pattern.permute.xlu0 1
    %196 = vperm.xlu0 %195, %v41
    %v197 = vpop.permute.xlu0 %196
    %v201 = vlaneseq
    %v202 = vshrl.u32 %v201, 7
    %v203 = vsub.s32 0, %v202
    %v204 = vrot.slane %v37, %v203
    %v205 = vlaneseq
    %v206 = vshrl.u32 %v205, 7
    %v207 = vsub.s32 1, %v206
    %v208 = vrot.slane %v37, %v207
    %v209 = vlaneseq
    %v210 = vshrl.u32 %v209, 7
    %v211 = vsub.s32 2, %v210
    %v212 = vrot.slane %v37, %v211
    %v213 = vlaneseq
    %v214 = vshrl.u32 %v213, 7
    %v215 = vsub.s32 3, %v214
    %v216 = vrot.slane %v37, %v215
    %v217 = vlaneseq
    %v218 = vshrl.u32 %v217, 7
    %v219 = vsub.s32 4, %v218
    %v220 = vrot.slane %v37, %v219
    %v221 = vlaneseq
    %v222 = vshrl.u32 %v221, 7
    %v223 = vsub.s32 5, %v222
    %v224 = vrot.slane %v37, %v223
    %v225 = vlaneseq
    %v226 = vshrl.u32 %v225, 7
    %v227 = vsub.s32 6, %v226
    %v228 = vrot.slane %v37, %v227
    %v229 = vlaneseq
    %v230 = vshrl.u32 %v229, 7
    %v231 = vsub.s32 7, %v230
    %v232 = vrot.slane %v37, %v231
    %v233 = vlaneseq
    %v234 = vshrl.u32 %v233, 7
    %v235 = vsub.s32 0, %v234
    %v236 = vrot.slane %v38, %v235
    %v237 = vlaneseq
    %v238 = vshrl.u32 %v237, 7
    %v239 = vsub.s32 1, %v238
    %v240 = vrot.slane %v38, %v239
    %v241 = vlaneseq
    %v242 = vshrl.u32 %v241, 7
    %v243 = vsub.s32 2, %v242
    %v244 = vrot.slane %v38, %v243
    %v245 = vlaneseq
    %v246 = vshrl.u32 %v245, 7
    %v247 = vsub.s32 3, %v246
    %v248 = vrot.slane %v38, %v247
    %v249 = vlaneseq
    %v250 = vshrl.u32 %v249, 7
    %v251 = vsub.s32 4, %v250
    %v252 = vrot.slane %v38, %v251
    %v253 = vlaneseq
    %v254 = vshrl.u32 %v253, 7
    %v255 = vsub.s32 5, %v254
    %v256 = vrot.slane %v38, %v255
    %v257 = vlaneseq
    %v258 = vshrl.u32 %v257, 7
    %v259 = vsub.s32 6, %v258
    %v260 = vrot.slane %v38, %v259
    %v261 = vlaneseq
    %v262 = vshrl.u32 %v261, 7
    %v263 = vsub.s32 7, %v262
    %v264 = vrot.slane %v38, %v263
    %v281 = vmul.f32 %v189, %v204
    %v282 = vmul.f32 %v189, %v208
    %v283 = vmul.f32 %v189, %v212
    %v284 = vmul.f32 %v189, %v216
    %v285 = vmul.f32 %v189, %v220
    %v286 = vmul.f32 %v189, %v224
    %v287 = vmul.f32 %v189, %v228
    %v288 = vmul.f32 %v189, %v232
    %v289 = vmul.f32 %v189, %v236
    %v290 = vmul.f32 %v189, %v240
    %v291 = vmul.f32 %v189, %v244
    %v292 = vmul.f32 %v189, %v248
    %v293 = vmul.f32 %v189, %v252
    %v294 = vmul.f32 %v189, %v256
    %v295 = vmul.f32 %v189, %v260
    %v296 = vmul.f32 %v189, %v264
    %v297 = vmul.f32 %v193, %v204
    %v298 = vmul.f32 %v193, %v208
    %v299 = vmul.f32 %v193, %v212
    %v300 = vmul.f32 %v193, %v216
    %v301 = vmul.f32 %v193, %v220
    %v302 = vmul.f32 %v193, %v224
    %v303 = vmul.f32 %v193, %v228
    %v304 = vmul.f32 %v193, %v232
    %v305 = vmul.f32 %v193, %v236
    %v306 = vmul.f32 %v193, %v240
    %v307 = vmul.f32 %v193, %v244
    %v308 = vmul.f32 %v193, %v248
    %v309 = vmul.f32 %v193, %v252
    %v310 = vmul.f32 %v193, %v256
    %v311 = vmul.f32 %v193, %v260
    %v312 = vmul.f32 %v193, %v264
    %v313 = vmul.f32 %v197, %v204
    %v314 = vmul.f32 %v197, %v208
    %v315 = vmul.f32 %v197, %v212
    %v316 = vmul.f32 %v197, %v216
    %v317 = vmul.f32 %v197, %v220
    %v318 = vmul.f32 %v197, %v224
    %v319 = vmul.f32 %v197, %v228
    %v320 = vmul.f32 %v197, %v232
    %v321 = vmul.f32 %v197, %v236
    %v322 = vmul.f32 %v197, %v240
    %v323 = vmul.f32 %v197, %v244
    %v324 = vmul.f32 %v197, %v248
    %v325 = vmul.f32 %v197, %v252
    %v326 = vmul.f32 %v197, %v256
    %v327 = vmul.f32 %v197, %v260
    %v328 = vmul.f32 %v197, %v264
    %v329 = vadd.f32 %v139, %v281
    %v330 = vadd.f32 %v140, %v282
    %v331 = vadd.f32 %v141, %v283
    %v332 = vadd.f32 %v142, %v284
    %v333 = vadd.f32 %v143, %v285
    %v334 = vadd.f32 %v144, %v286
    %v335 = vadd.f32 %v145, %v287
    %v336 = vadd.f32 %v146, %v288
    %v337 = vadd.f32 %v147, %v289
    %v338 = vadd.f32 %v148, %v290
    %v339 = vadd.f32 %v149, %v291
    %v340 = vadd.f32 %v150, %v292
    %v341 = vadd.f32 %v151, %v293
    %v342 = vadd.f32 %v152, %v294
    %v343 = vadd.f32 %v153, %v295
    %v344 = vadd.f32 %v154, %v296
    %v345 = vadd.f32 %v155, %v297
    %v346 = vadd.f32 %v156, %v298
    %v347 = vadd.f32 %v157, %v299
    %v348 = vadd.f32 %v158, %v300
    %v349 = vadd.f32 %v159, %v301
    %v350 = vadd.f32 %v160, %v302
    %v351 = vadd.f32 %v161, %v303
    %v352 = vadd.f32 %v162, %v304
    %v353 = vadd.f32 %v163, %v305
    %v354 = vadd.f32 %v164, %v306
    %v355 = vadd.f32 %v165, %v307
    %v356 = vadd.f32 %v166, %v308
    %v357 = vadd.f32 %v167, %v309
    %v358 = vadd.f32 %v168, %v310
    %v359 = vadd.f32 %v169, %v311
    %v360 = vadd.f32 %v170, %v312
    %v361 = vadd.f32 %v171, %v313
    %v362 = vadd.f32 %v172, %v314
    %v363 = vadd.f32 %v173, %v315
    %v364 = vadd.f32 %v174, %v316
    %v365 = vadd.f32 %v175, %v317
    %v366 = vadd.f32 %v176, %v318
    %v367 = vadd.f32 %v177, %v319
    %v368 = vadd.f32 %v178, %v320
    %v369 = vadd.f32 %v179, %v321
    %v370 = vadd.f32 %v180, %v322
    %v371 = vadd.f32 %v181, %v323
    %v372 = vadd.f32 %v182, %v324
    %v373 = vadd.f32 %v183, %v325
    %v374 = vadd.f32 %v184, %v326
    %v375 = vadd.f32 %v185, %v327
    %v376 = vadd.f32 %v186, %v328
    %v377 = vld [vmem:[%s2] sm:$0xff]
    %v378 = vld [vmem:[%s2 + $0x8] sm:$0xff]
    %v379 = vld [vmem:[%s2 + $0x10] sm:$0xf]
    %381 = vset.pattern.permute.xlu0 0
    %382 = vperm.xlu0 %381, %v377
    %v383 = vpop.permute.xlu0 %382
    %386 = vset.pattern.permute.xlu0 0
    %387 = vperm.xlu0 %386, %v378
    %v388 = vpop.permute.xlu0 %387
    %391 = vset.pattern.permute.xlu0 0
    %392 = vperm.xlu0 %391, %v379
    %v393 = vpop.permute.xlu0 %392
    %v395 = vadd.f32 %v329, %v383
    %v396 = vadd.f32 %v330, %v383
    %v397 = vadd.f32 %v331, %v383
    %v398 = vadd.f32 %v332, %v383
    %v399 = vadd.f32 %v333, %v383
    %v400 = vadd.f32 %v334, %v383
    %v401 = vadd.f32 %v335, %v383
    %v402 = vadd.f32 %v336, %v383
    %v403 = vadd.f32 %v337, %v383
    %v404 = vadd.f32 %v338, %v383
    %v405 = vadd.f32 %v339, %v383
    %v406 = vadd.f32 %v340, %v383
    %v407 = vadd.f32 %v341, %v383
    %v408 = vadd.f32 %v342, %v383
    %v409 = vadd.f32 %v343, %v383
    %v410 = vadd.f32 %v344, %v383
    %v411 = vadd.f32 %v345, %v388
    %v412 = vadd.f32 %v346, %v388
    %v413 = vadd.f32 %v347, %v388
    %v414 = vadd.f32 %v348, %v388
    %v415 = vadd.f32 %v349, %v388
    %v416 = vadd.f32 %v350, %v388
    %v417 = vadd.f32 %v351, %v388
    %v418 = vadd.f32 %v352, %v388
    %v419 = vadd.f32 %v353, %v388
    %v420 = vadd.f32 %v354, %v388
    %v421 = vadd.f32 %v355, %v388
    %v422 = vadd.f32 %v356, %v388
    %v423 = vadd.f32 %v357, %v388
    %v424 = vadd.f32 %v358, %v388
    %v425 = vadd.f32 %v359, %v388
    %v426 = vadd.f32 %v360, %v388
    %v427 = vadd.f32 %v361, %v393
    %v428 = vadd.f32 %v362, %v393
    %v429 = vadd.f32 %v363, %v393
    %v430 = vadd.f32 %v364, %v393
    %v431 = vadd.f32 %v365, %v393
    %v432 = vadd.f32 %v366, %v393
    %v433 = vadd.f32 %v367, %v393
    %v434 = vadd.f32 %v368, %v393
    %v435 = vadd.f32 %v369, %v393
    %v436 = vadd.f32 %v370, %v393
    %v437 = vadd.f32 %v371, %v393
    %v438 = vadd.f32 %v372, %v393
    %v439 = vadd.f32 %v373, %v393
    %v440 = vadd.f32 %v374, %v393
    %v441 = vadd.f32 %v375, %v393
    %v442 = vadd.f32 %v376, %v393
    %v443 = vtanh.pop %v395
    %v444 = vtanh.pop %v396
    %v445 = vtanh.pop %v397
    %v446 = vtanh.pop %v398
    %v447 = vtanh.pop %v399
    %v448 = vtanh.pop %v400
    %v449 = vtanh.pop %v401
    %v450 = vtanh.pop %v402
    %v451 = vtanh.pop %v403
    %v452 = vtanh.pop %v404
    %v453 = vtanh.pop %v405
    %v454 = vtanh.pop %v406
    %v455 = vtanh.pop %v407
    %v456 = vtanh.pop %v408
    %v457 = vtanh.pop %v409
    %v458 = vtanh.pop %v410
    %v459 = vtanh.pop %v411
    %v460 = vtanh.pop %v412
    %v461 = vtanh.pop %v413
    %v462 = vtanh.pop %v414
    %v463 = vtanh.pop %v415
    %v464 = vtanh.pop %v416
    %v465 = vtanh.pop %v417
    %v466 = vtanh.pop %v418
    %v467 = vtanh.pop %v419
    %v468 = vtanh.pop %v420
    %v469 = vtanh.pop %v421
    %v470 = vtanh.pop %v422
    %v471 = vtanh.pop %v423
    %v472 = vtanh.pop %v424
    %v473 = vtanh.pop %v425
    %v474 = vtanh.pop %v426
    %v475 = vtanh.pop %v427
    %v476 = vtanh.pop %v428
    %v477 = vtanh.pop %v429
    %v478 = vtanh.pop %v430
    %v479 = vtanh.pop %v431
    %v480 = vtanh.pop %v432
    %v481 = vtanh.pop %v433
    %v482 = vtanh.pop %v434
    %v483 = vtanh.pop %v435
    %v484 = vtanh.pop %v436
    %v485 = vtanh.pop %v437
    %v486 = vtanh.pop %v438
    %v487 = vtanh.pop %v439
    %v488 = vtanh.pop %v440
    %v489 = vtanh.pop %v441
    %v490 = vtanh.pop %v442
    %v491 = vld [vmem:[%s3] sm:$0xff]
    %v492 = vld [vmem:[%s3 + $0x8] sm:$0xff]
    %v493 = vld [vmem:[%s3 + $0x10] sm:$0xf]
    %v494 = vld [vmem:[%s4] sm:$0xff]
    %v495 = vld [vmem:[%s4 + $0x8] sm:$0xff]
    %v496 = vld [vmem:[%s4 + $0x10] sm:$0xf]
    %498 = vset.pattern.permute.xlu0 0
    %499 = vperm.xlu0 %498, %v494
    %v500 = vpop.permute.xlu0 %499
    %503 = vset.pattern.permute.xlu0 0
    %504 = vperm.xlu0 %503, %v495
    %v505 = vpop.permute.xlu0 %504
    %508 = vset.pattern.permute.xlu0 0
    %509 = vperm.xlu0 %508, %v496
    %v510 = vpop.permute.xlu0 %509
    %vm512 = vcmask 162816
    %v514 = vsel %vm512, %v491, 0
    %v517 = vsel %vm512, %v492, 0
    %v520 = vsel %vm512, %v493, 0
    %vm522 = vcmask 1043456
    %v524 = vsel %vm522, %v475, 0
    %v527 = vsel %vm522, %v476, 0
    %v530 = vsel %vm522, %v477, 0
    %v533 = vsel %vm522, %v478, 0
    %v536 = vsel %vm522, %v479, 0
    %v539 = vsel %vm522, %v480, 0
    %v542 = vsel %vm522, %v481, 0
    %v545 = vsel %vm522, %v482, 0
    %v548 = vsel %vm522, %v483, 0
    %v551 = vsel %vm522, %v484, 0
    %v554 = vsel %vm522, %v485, 0
    %v557 = vsel %vm522, %v486, 0
    %v560 = vsel %vm522, %v487, 0
    %v563 = vsel %vm522, %v488, 0
    %v566 = vsel %vm522, %v489, 0
    %v569 = vsel %vm522, %v490, 0
    %571 = vmatprep.subr.mxu0 %v444
    %572 = vmatpush1.msra.mxu0 %v443
    %573 = vmatprep.subr.mxu0 %v460
    %574 = vmatpush1.msra.mxu0 %v459
    %575 = vmatprep.subr.mxu0 %v527
    %576 = vmatpush1.msra.mxu0 %v524
    %577 = vmatprep.subr.mxu0 0.0
    %578 = vmatpush1.msra.mxu0 0.0
    %579 = vmatprep.subr.mxu0 0.0
    %580 = vmatpush1.msra.mxu0 0.0
    %581 = vmatprep.subr.mxu0 0.0
    %582 = vmatpush1.msra.mxu0 0.0
    %583 = vmatprep.subr.mxu0 0.0
    %584 = vmatpush1.msra.mxu0 0.0
    %585 = vmatprep.subr.mxu0 0.0
    %586 = vmatpush1.msra.mxu0 0.0
    %587 = vmatprep.subr.mxu0 0.0
    %588 = vmatpush1.msra.mxu0 0.0
    %589 = vmatprep.subr.mxu0 0.0
    %590 = vmatpush1.msra.mxu0 0.0
    %591 = vmatprep.subr.mxu0 0.0
    %592 = vmatpush1.msra.mxu0 0.0
    %593 = vmatprep.subr.mxu0 0.0
    %594 = vmatpush1.msra.mxu0 0.0
    %595 = vmatprep.subr.mxu0 0.0
    %596 = vmatpush1.msra.mxu0 0.0
    %597 = vmatprep.subr.mxu0 0.0
    %598 = vmatpush1.msra.mxu0 0.0
    %599 = vmatprep.subr.mxu0 0.0
    %600 = vmatpush1.msra.mxu0 0.0
    %601 = vmatprep.subr.mxu0 0.0
    %602 = vmatpush1.msra.mxu0 0.0
    %603 = vmatprep.subr.mxu0 0.0
    %604 = vmatpush1.msra.mxu0 0.0
    %605 = vmatprep.subr.mxu0 0.0
    %606 = vmatpush1.msra.mxu0 0.0
    %607 = vmatprep.subr.mxu0 0.0
    %608 = vmatpush1.msra.mxu0 0.0
    %609 = vmatprep.subr.mxu0 0.0
    %610 = vmatpush1.msra.mxu0 0.0
    %611 = vmatprep.subr.mxu0 0.0
    %612 = vmatpush1.msra.mxu0 0.0
    %613 = vmatprep.subr.mxu0 0.0
    %614 = vmatpush1.msra.mxu0 0.0
    %615 = vmatprep.subr.mxu0 0.0
    %616 = vmatpush1.msra.mxu0 0.0
    %617 = vmatprep.subr.mxu0 0.0
    %618 = vmatpush1.msra.mxu0 0.0
    %619 = vmatprep.subr.mxu0 0.0
    %620 = vmatpush1.msra.mxu0 0.0
    %621 = vmatprep.subr.mxu0 0.0
    %622 = vmatpush1.msra.mxu0 0.0
    %623 = vmatprep.subr.mxu0 0.0
    %624 = vmatpush1.msra.mxu0 0.0
    %625 = vmatprep.subr.mxu0 0.0
    %626 = vmatpush1.msra.mxu0 0.0
    %627 = vmatprep.subr.mxu0 0.0
    %628 = vmatpush1.msra.mxu0 0.0
    %629 = vmatprep.subr.mxu0 0.0
    %630 = vmatpush1.msra.mxu0 0.0
    %631 = vmatprep.subr.mxu0 0.0
    %632 = vmatpush1.msra.mxu0 0.0
    %633 = vmatprep.subr.mxu0 0.0
    %634 = vmatpush1.msra.mxu0 0.0
    %635 = vmatprep.mubr.f32.mxu0 0.0
    %636 = vmatmul.mubr.f32.gmra.mrb[0].mxu0 %v514
    %v637 = vpop.f32.mrb[0].mxu0
    %v638 = vadd.f32 %v500, %v637
    %v639 = vpop.f32.mrb[0].mxu0
    %v640 = vadd.f32 %v500, %v639
    %641 = vmatprep.mubr.f32.mxu0 0.0
    %642 = vmatmul.mubr.f32.gmra.mrb[0].mxu0 %v517
    %v643 = vpop.f32.mrb[0].mxu0
    %v644 = vadd.f32 %v505, %v643
    %v645 = vpop.f32.mrb[0].mxu0
    %v646 = vadd.f32 %v505, %v645
    %647 = vmatprep.mubr.f32.mxu0 0.0
    %648 = vmatmul.mubr.f32.gmra.mrb[0].mxu0 %v520
    %v649 = vpop.f32.mrb[0].mxu0
    %v650 = vadd.f32 %v510, %v649
    %v651 = vpop.f32.mrb[0].mxu0
    %v652 = vadd.f32 %v510, %v651
    %653 = vdwg.mxu0
    %654 = vmatprep.subr.mxu0 %v446
    %655 = vmatpush1.msra.mxu0 %v445
    %656 = vmatprep.subr.mxu0 %v462
    %657 = vmatpush1.msra.mxu0 %v461
    %658 = vmatprep.subr.mxu0 %v533
    %659 = vmatpush1.msra.mxu0 %v530
    %660 = vmatprep.subr.mxu0 0.0
    %661 = vmatpush1.msra.mxu0 0.0
    %662 = vmatprep.subr.mxu0 0.0
    %663 = vmatpush1.msra.mxu0 0.0
    %664 = vmatprep.subr.mxu0 0.0
    %665 = vmatpush1.msra.mxu0 0.0
    %666 = vmatprep.subr.mxu0 0.0
    %667 = vmatpush1.msra.mxu0 0.0
    %668 = vmatprep.subr.mxu0 0.0
    %669 = vmatpush1.msra.mxu0 0.0
    %670 = vmatprep.subr.mxu0 0.0
    %671 = vmatpush1.msra.mxu0 0.0
    %672 = vmatprep.subr.mxu0 0.0
    %673 = vmatpush1.msra.mxu0 0.0
    %674 = vmatprep.subr.mxu0 0.0
    %675 = vmatpush1.msra.mxu0 0.0
    %676 = vmatprep.subr.mxu0 0.0
    %677 = vmatpush1.msra.mxu0 0.0
    %678 = vmatprep.subr.mxu0 0.0
    %679 = vmatpush1.msra.mxu0 0.0
    %680 = vmatprep.subr.mxu0 0.0
    %681 = vmatpush1.msra.mxu0 0.0
    %682 = vmatprep.subr.mxu0 0.0
    %683 = vmatpush1.msra.mxu0 0.0
    %684 = vmatprep.subr.mxu0 0.0
    %685 = vmatpush1.msra.mxu0 0.0
    %686 = vmatprep.subr.mxu0 0.0
    %687 = vmatpush1.msra.mxu0 0.0
    %688 = vmatprep.subr.mxu0 0.0
    %689 = vmatpush1.msra.mxu0 0.0
    %690 = vmatprep.subr.mxu0 0.0
    %691 = vmatpush1.msra.mxu0 0.0
    %692 = vmatprep.subr.mxu0 0.0
    %693 = vmatpush1.msra.mxu0 0.0
    %694 = vmatprep.subr.mxu0 0.0
    %695 = vmatpush1.msra.mxu0 0.0
    %696 = vmatprep.subr.mxu0 0.0
    %697 = vmatpush1.msra.mxu0 0.0
    %698 = vmatprep.subr.mxu0 0.0
    %699 = vmatpush1.msra.mxu0 0.0
    %700 = vmatprep.subr.mxu0 0.0
    %701 = vmatpush1.msra.mxu0 0.0
    %702 = vmatprep.subr.mxu0 0.0
    %703 = vmatpush1.msra.mxu0 0.0
    %704 = vmatprep.subr.mxu0 0.0
    %705 = vmatpush1.msra.mxu0 0.0
    %706 = vmatprep.subr.mxu0 0.0
    %707 = vmatpush1.msra.mxu0 0.0
    %708 = vmatprep.subr.mxu0 0.0
    %709 = vmatpush1.msra.mxu0 0.0
    %710 = vmatprep.subr.mxu0 0.0
    %711 = vmatpush1.msra.mxu0 0.0
    %712 = vmatprep.subr.mxu0 0.0
    %713 = vmatpush1.msra.mxu0 0.0
    %714 = vmatprep.subr.mxu0 0.0
    %715 = vmatpush1.msra.mxu0 0.0
    %716 = vmatprep.subr.mxu0 0.0
    %717 = vmatpush1.msra.mxu0 0.0
    %718 = vmatprep.mubr.f32.mxu0 0.0
    %719 = vmatmul.mubr.f32.gmra.mrb[0].mxu0 %v514
    %v720 = vpop.f32.mrb[0].mxu0
    %v721 = vadd.f32 %v500, %v720
    %v722 = vpop.f32.mrb[0].mxu0
    %v723 = vadd.f32 %v500, %v722
    %724 = vmatprep.mubr.f32.mxu0 0.0
    %725 = vmatmul.mubr.f32.gmra.mrb[0].mxu0 %v517
    %v726 = vpop.f32.mrb[0].mxu0
    %v727 = vadd.f32 %v505, %v726
    %v728 = vpop.f32.mrb[0].mxu0
    %v729 = vadd.f32 %v505, %v728
    %730 = vmatprep.mubr.f32.mxu0 0.0
    %731 = vmatmul.mubr.f32.gmra.mrb[0].mxu0 %v520
    %v732 = vpop.f32.mrb[0].mxu0
    %v733 = vadd.f32 %v510, %v732
    %v734 = vpop.f32.mrb[0].mxu0
    %v735 = vadd.f32 %v510, %v734
    %736 = vdwg.mxu0
    %737 = vmatprep.subr.mxu0 %v448
    %738 = vmatpush1.msra.mxu0 %v447
    %739 = vmatprep.subr.mxu0 %v464
    %740 = vmatpush1.msra.mxu0 %v463
    %741 = vmatprep.subr.mxu0 %v539
    %742 = vmatpush1.msra.mxu0 %v536
    %743 = vmatprep.subr.mxu0 0.0
    %744 = vmatpush1.msra.mxu0 0.0
    %745 = vmatprep.subr.mxu0 0.0
    %746 = vmatpush1.msra.mxu0 0.0
    %747 = vmatprep.subr.mxu0 0.0
    %748 = vmatpush1.msra.mxu0 0.0
    %749 = vmatprep.subr.mxu0 0.0
    %750 = vmatpush1.msra.mxu0 0.0
    %751 = vmatprep.subr.mxu0 0.0
    %752 = vmatpush1.msra.mxu0 0.0
    %753 = vmatprep.subr.mxu0 0.0
    %754 = vmatpush1.msra.mxu0 0.0
    %755 = vmatprep.subr.mxu0 0.0
    %756 = vmatpush1.msra.mxu0 0.0
    %757 = vmatprep.subr.mxu0 0.0
    %758 = vmatpush1.msra.mxu0 0.0
    %759 = vmatprep.subr.mxu0 0.0
    %760 = vmatpush1.msra.mxu0 0.0
    %761 = vmatprep.subr.mxu0 0.0
    %762 = vmatpush1.msra.mxu0 0.0
    %763 = vmatprep.subr.mxu0 0.0
    %764 = vmatpush1.msra.mxu0 0.0
    %765 = vmatprep.subr.mxu0 0.0
    %766 = vmatpush1.msra.mxu0 0.0
    %767 = vmatprep.subr.mxu0 0.0
    %768 = vmatpush1.msra.mxu0 0.0
    %769 = vmatprep.subr.mxu0 0.0
    %770 = vmatpush1.msra.mxu0 0.0
    %771 = vmatprep.subr.mxu0 0.0
    %772 = vmatpush1.msra.mxu0 0.0
    %773 = vmatprep.subr.mxu0 0.0
    %774 = vmatpush1.msra.mxu0 0.0
    %775 = vmatprep.subr.mxu0 0.0
    %776 = vmatpush1.msra.mxu0 0.0
    %777 = vmatprep.subr.mxu0 0.0
    %778 = vmatpush1.msra.mxu0 0.0
    %779 = vmatprep.subr.mxu0 0.0
    %780 = vmatpush1.msra.mxu0 0.0
    %781 = vmatprep.subr.mxu0 0.0
    %782 = vmatpush1.msra.mxu0 0.0
    %783 = vmatprep.subr.mxu0 0.0
    %784 = vmatpush1.msra.mxu0 0.0
    %785 = vmatprep.subr.mxu0 0.0
    %786 = vmatpush1.msra.mxu0 0.0
    %787 = vmatprep.subr.mxu0 0.0
    %788 = vmatpush1.msra.mxu0 0.0
    %789 = vmatprep.subr.mxu0 0.0
    %790 = vmatpush1.msra.mxu0 0.0
    %791 = vmatprep.subr.mxu0 0.0
    %792 = vmatpush1.msra.mxu0 0.0
    %793 = vmatprep.subr.mxu0 0.0
    %794 = vmatpush1.msra.mxu0 0.0
    %795 = vmatprep.subr.mxu0 0.0
    %796 = vmatpush1.msra.mxu0 0.0
    %797 = vmatprep.subr.mxu0 0.0
    %798 = vmatpush1.msra.mxu0 0.0
    %799 = vmatprep.subr.mxu0 0.0
    %800 = vmatpush1.msra.mxu0 0.0
    %801 = vmatprep.mubr.f32.mxu0 0.0
    %802 = vmatmul.mubr.f32.gmra.mrb[0].mxu0 %v514
    %v803 = vpop.f32.mrb[0].mxu0
    %v804 = vadd.f32 %v500, %v803
    %v805 = vpop.f32.mrb[0].mxu0
    %v806 = vadd.f32 %v500, %v805
    %807 = vmatprep.mubr.f32.mxu0 0.0
    %808 = vmatmul.mubr.f32.gmra.mrb[0].mxu0 %v517
    %v809 = vpop.f32.mrb[0].mxu0
    %v810 = vadd.f32 %v505, %v809
    %v811 = vpop.f32.mrb[0].mxu0
    %v812 = vadd.f32 %v505, %v811
    %813 = vmatprep.mubr.f32.mxu0 0.0
    %814 = vmatmul.mubr.f32.gmra.mrb[0].mxu0 %v520
    %v815 = vpop.f32.mrb[0].mxu0
    %v816 = vadd.f32 %v510, %v815
    %v817 = vpop.f32.mrb[0].mxu0
    %v818 = vadd.f32 %v510, %v817
    %819 = vdwg.mxu0
    %820 = vmatprep.subr.mxu0 %v450
    %821 = vmatpush1.msra.mxu0 %v449
    %822 = vmatprep.subr.mxu0 %v466
    %823 = vmatpush1.msra.mxu0 %v465
    %824 = vmatprep.subr.mxu0 %v545
    %825 = vmatpush1.msra.mxu0 %v542
    %826 = vmatprep.subr.mxu0 0.0
    %827 = vmatpush1.msra.mxu0 0.0
    %828 = vmatprep.subr.mxu0 0.0
    %829 = vmatpush1.msra.mxu0 0.0
    %830 = vmatprep.subr.mxu0 0.0
    %831 = vmatpush1.msra.mxu0 0.0
    %832 = vmatprep.subr.mxu0 0.0
    %833 = vmatpush1.msra.mxu0 0.0
    %834 = vmatprep.subr.mxu0 0.0
    %835 = vmatpush1.msra.mxu0 0.0
    %836 = vmatprep.subr.mxu0 0.0
    %837 = vmatpush1.msra.mxu0 0.0
    %838 = vmatprep.subr.mxu0 0.0
    %839 = vmatpush1.msra.mxu0 0.0
    %840 = vmatprep.subr.mxu0 0.0
    %841 = vmatpush1.msra.mxu0 0.0
    %842 = vmatprep.subr.mxu0 0.0
    %843 = vmatpush1.msra.mxu0 0.0
    %844 = vmatprep.subr.mxu0 0.0
    %845 = vmatpush1.msra.mxu0 0.0
    %846 = vmatprep.subr.mxu0 0.0
    %847 = vmatpush1.msra.mxu0 0.0
    %848 = vmatprep.subr.mxu0 0.0
    %849 = vmatpush1.msra.mxu0 0.0
    %850 = vmatprep.subr.mxu0 0.0
    %851 = vmatpush1.msra.mxu0 0.0
    %852 = vmatprep.subr.mxu0 0.0
    %853 = vmatpush1.msra.mxu0 0.0
    %854 = vmatprep.subr.mxu0 0.0
    %855 = vmatpush1.msra.mxu0 0.0
    %856 = vmatprep.subr.mxu0 0.0
    %857 = vmatpush1.msra.mxu0 0.0
    %858 = vmatprep.subr.mxu0 0.0
    %859 = vmatpush1.msra.mxu0 0.0
    %860 = vmatprep.subr.mxu0 0.0
    %861 = vmatpush1.msra.mxu0 0.0
    %862 = vmatprep.subr.mxu0 0.0
    %863 = vmatpush1.msra.mxu0 0.0
    %864 = vmatprep.subr.mxu0 0.0
    %865 = vmatpush1.msra.mxu0 0.0
    %866 = vmatprep.subr.mxu0 0.0
    %867 = vmatpush1.msra.mxu0 0.0
    %868 = vmatprep.subr.mxu0 0.0
    %869 = vmatpush1.msra.mxu0 0.0
    %870 = vmatprep.subr.mxu0 0.0
    %871 = vmatpush1.msra.mxu0 0.0
    %872 = vmatprep.subr.mxu0 0.0
    %873 = vmatpush1.msra.mxu0 0.0
    %874 = vmatprep.subr.mxu0 0.0
    %875 = vmatpush1.msra.mxu0 0.0
    %876 = vmatprep.subr.mxu0 0.0
    %877 = vmatpush1.msra.mxu0 0.0
    %878 = vmatprep.subr.mxu0 0.0
    %879 = vmatpush1.msra.mxu0 0.0
    %880 = vmatprep.subr.mxu0 0.0
    %881 = vmatpush1.msra.mxu0 0.0
    %882 = vmatprep.subr.mxu0 0.0
    %883 = vmatpush1.msra.mxu0 0.0
    %884 = vmatprep.mubr.f32.mxu0 0.0
    %885 = vmatmul.mubr.f32.gmra.mrb[0].mxu0 %v514
    %v886 = vpop.f32.mrb[0].mxu0
    %v887 = vadd.f32 %v500, %v886
    %v888 = vpop.f32.mrb[0].mxu0
    %v889 = vadd.f32 %v500, %v888
    %890 = vmatprep.mubr.f32.mxu0 0.0
    %891 = vmatmul.mubr.f32.gmra.mrb[0].mxu0 %v517
    %v892 = vpop.f32.mrb[0].mxu0
    %v893 = vadd.f32 %v505, %v892
    %v894 = vpop.f32.mrb[0].mxu0
    %v895 = vadd.f32 %v505, %v894
    %896 = vmatprep.mubr.f32.mxu0 0.0
    %897 = vmatmul.mubr.f32.gmra.mrb[0].mxu0 %v520
    %v898 = vpop.f32.mrb[0].mxu0
    %v899 = vadd.f32 %v510, %v898
    %v900 = vpop.f32.mrb[0].mxu0
    %v901 = vadd.f32 %v510, %v900
    %902 = vdwg.mxu0
    %903 = vmatprep.subr.mxu0 %v452
    %904 = vmatpush1.msra.mxu0 %v451
    %905 = vmatprep.subr.mxu0 %v468
    %906 = vmatpush1.msra.mxu0 %v467
    %907 = vmatprep.subr.mxu0 %v551
    %908 = vmatpush1.msra.mxu0 %v548
    %909 = vmatprep.subr.mxu0 0.0
    %910 = vmatpush1.msra.mxu0 0.0
    %911 = vmatprep.subr.mxu0 0.0
    %912 = vmatpush1.msra.mxu0 0.0
    %913 = vmatprep.subr.mxu0 0.0
    %914 = vmatpush1.msra.mxu0 0.0
    %915 = vmatprep.subr.mxu0 0.0
    %916 = vmatpush1.msra.mxu0 0.0
    %917 = vmatprep.subr.mxu0 0.0
    %918 = vmatpush1.msra.mxu0 0.0
    %919 = vmatprep.subr.mxu0 0.0
    %920 = vmatpush1.msra.mxu0 0.0
    %921 = vmatprep.subr.mxu0 0.0
    %922 = vmatpush1.msra.mxu0 0.0
    %923 = vmatprep.subr.mxu0 0.0
    %924 = vmatpush1.msra.mxu0 0.0
    %925 = vmatprep.subr.mxu0 0.0
    %926 = vmatpush1.msra.mxu0 0.0
    %927 = vmatprep.subr.mxu0 0.0
    %928 = vmatpush1.msra.mxu0 0.0
    %929 = vmatprep.subr.mxu0 0.0
    %930 = vmatpush1.msra.mxu0 0.0
    %931 = vmatprep.subr.mxu0 0.0
    %932 = vmatpush1.msra.mxu0 0.0
    %933 = vmatprep.subr.mxu0 0.0
    %934 = vmatpush1.msra.mxu0 0.0
    %935 = vmatprep.subr.mxu0 0.0
    %936 = vmatpush1.msra.mxu0 0.0
    %937 = vmatprep.subr.mxu0 0.0
    %938 = vmatpush1.msra.mxu0 0.0
    %939 = vmatprep.subr.mxu0 0.0
    %940 = vmatpush1.msra.mxu0 0.0
    %941 = vmatprep.subr.mxu0 0.0
    %942 = vmatpush1.msra.mxu0 0.0
    %943 = vmatprep.subr.mxu0 0.0
    %944 = vmatpush1.msra.mxu0 0.0
    %945 = vmatprep.subr.mxu0 0.0
    %946 = vmatpush1.msra.mxu0 0.0
    %947 = vmatprep.subr.mxu0 0.0
    %948 = vmatpush1.msra.mxu0 0.0
    %949 = vmatprep.subr.mxu0 0.0
    %950 = vmatpush1.msra.mxu0 0.0
    %951 = vmatprep.subr.mxu0 0.0
    %952 = vmatpush1.msra.mxu0 0.0
    %953 = vmatprep.subr.mxu0 0.0
    %954 = vmatpush1.msra.mxu0 0.0
    %955 = vmatprep.subr.mxu0 0.0
    %956 = vmatpush1.msra.mxu0 0.0
    %957 = vmatprep.subr.mxu0 0.0
    %958 = vmatpush1.msra.mxu0 0.0
    %959 = vmatprep.subr.mxu0 0.0
    %960 = vmatpush1.msra.mxu0 0.0
    %961 = vmatprep.subr.mxu0 0.0
    %962 = vmatpush1.msra.mxu0 0.0
    %963 = vmatprep.subr.mxu0 0.0
    %964 = vmatpush1.msra.mxu0 0.0
    %965 = vmatprep.subr.mxu0 0.0
    %966 = vmatpush1.msra.mxu0 0.0
    %967 = vmatprep.mubr.f32.mxu0 0.0
    %968 = vmatmul.mubr.f32.gmra.mrb[0].mxu0 %v514
    %v969 = vpop.f32.mrb[0].mxu0
    %v970 = vadd.f32 %v500, %v969
    %v971 = vpop.f32.mrb[0].mxu0
    %v972 = vadd.f32 %v500, %v971
    %973 = vmatprep.mubr.f32.mxu0 0.0
    %974 = vmatmul.mubr.f32.gmra.mrb[0].mxu0 %v517
    %v975 = vpop.f32.mrb[0].mxu0
    %v976 = vadd.f32 %v505, %v975
    %v977 = vpop.f32.mrb[0].mxu0
    %v978 = vadd.f32 %v505, %v977
    %979 = vmatprep.mubr.f32.mxu0 0.0
    %980 = vmatmul.mubr.f32.gmra.mrb[0].mxu0 %v520
    %v981 = vpop.f32.mrb[0].mxu0
    %v982 = vadd.f32 %v510, %v981
    %v983 = vpop.f32.mrb[0].mxu0
    %v984 = vadd.f32 %v510, %v983
    %985 = vdwg.mxu0
    %986 = vmatprep.subr.mxu0 %v454
    %987 = vmatpush1.msra.mxu0 %v453
    %988 = vmatprep.subr.mxu0 %v470
    %989 = vmatpush1.msra.mxu0 %v469
    %990 = vmatprep.subr.mxu0 %v557
    %991 = vmatpush1.msra.mxu0 %v554
    %992 = vmatprep.subr.mxu0 0.0
    %993 = vmatpush1.msra.mxu0 0.0
    %994 = vmatprep.subr.mxu0 0.0
    %995 = vmatpush1.msra.mxu0 0.0
    %996 = vmatprep.subr.mxu0 0.0
    %997 = vmatpush1.msra.mxu0 0.0
    %998 = vmatprep.subr.mxu0 0.0
    %999 = vmatpush1.msra.mxu0 0.0
    %1000 = vmatprep.subr.mxu0 0.0
    %1001 = vmatpush1.msra.mxu0 0.0
    %1002 = vmatprep.subr.mxu0 0.0
    %1003 = vmatpush1.msra.mxu0 0.0
    %1004 = vmatprep.subr.mxu0 0.0
    %1005 = vmatpush1.msra.mxu0 0.0
    %1006 = vmatprep.subr.mxu0 0.0
    %1007 = vmatpush1.msra.mxu0 0.0
    %1008 = vmatprep.subr.mxu0 0.0
    %1009 = vmatpush1.msra.mxu0 0.0
    %1010 = vmatprep.subr.mxu0 0.0
    %1011 = vmatpush1.msra.mxu0 0.0
    %1012 = vmatprep.subr.mxu0 0.0
    %1013 = vmatpush1.msra.mxu0 0.0
    %1014 = vmatprep.subr.mxu0 0.0
    %1015 = vmatpush1.msra.mxu0 0.0
    %1016 = vmatprep.subr.mxu0 0.0
    %1017 = vmatpush1.msra.mxu0 0.0
    %1018 = vmatprep.subr.mxu0 0.0
    %1019 = vmatpush1.msra.mxu0 0.0
    %1020 = vmatprep.subr.mxu0 0.0
    %1021 = vmatpush1.msra.mxu0 0.0
    %1022 = vmatprep.subr.mxu0 0.0
    %1023 = vmatpush1.msra.mxu0 0.0
    %1024 = vmatprep.subr.mxu0 0.0
    %1025 = vmatpush1.msra.mxu0 0.0
    %1026 = vmatprep.subr.mxu0 0.0
    %1027 = vmatpush1.msra.mxu0 0.0
    %1028 = vmatprep.subr.mxu0 0.0
    %1029 = vmatpush1.msra.mxu0 0.0
    %1030 = vmatprep.subr.mxu0 0.0
    %1031 = vmatpush1.msra.mxu0 0.0
    %1032 = vmatprep.subr.mxu0 0.0
    %1033 = vmatpush1.msra.mxu0 0.0
    %1034 = vmatprep.subr.mxu0 0.0
    %1035 = vmatpush1.msra.mxu0 0.0
    %1036 = vmatprep.subr.mxu0 0.0
    %1037 = vmatpush1.msra.mxu0 0.0
    %1038 = vmatprep.subr.mxu0 0.0
    %1039 = vmatpush1.msra.mxu0 0.0
    %1040 = vmatprep.subr.mxu0 0.0
    %1041 = vmatpush1.msra.mxu0 0.0
    %1042 = vmatprep.subr.mxu0 0.0
    %1043 = vmatpush1.msra.mxu0 0.0
    %1044 = vmatprep.subr.mxu0 0.0
    %1045 = vmatpush1.msra.mxu0 0.0
    %1046 = vmatprep.subr.mxu0 0.0
    %1047 = vmatpush1.msra.mxu0 0.0
    %1048 = vmatprep.subr.mxu0 0.0
    %1049 = vmatpush1.msra.mxu0 0.0
    %1050 = vmatprep.mubr.f32.mxu0 0.0
    %1051 = vmatmul.mubr.f32.gmra.mrb[0].mxu0 %v514
    %v1052 = vpop.f32.mrb[0].mxu0
    %v1053 = vadd.f32 %v500, %v1052
    %v1054 = vpop.f32.mrb[0].mxu0
    %v1055 = vadd.f32 %v500, %v1054
    %1056 = vmatprep.mubr.f32.mxu0 0.0
    %1057 = vmatmul.mubr.f32.gmra.mrb[0].mxu0 %v517
    %v1058 = vpop.f32.mrb[0].mxu0
    %v1059 = vadd.f32 %v505, %v1058
    %v1060 = vpop.f32.mrb[0].mxu0
    %v1061 = vadd.f32 %v505, %v1060
    %1062 = vmatprep.mubr.f32.mxu0 0.0
    %1063 = vmatmul.mubr.f32.gmra.mrb[0].mxu0 %v520
    %v1064 = vpop.f32.mrb[0].mxu0
    %v1065 = vadd.f32 %v510, %v1064
    %v1066 = vpop.f32.mrb[0].mxu0
    %v1067 = vadd.f32 %v510, %v1066
    %1068 = vdwg.mxu0
    %1069 = vmatprep.subr.mxu0 %v456
    %1070 = vmatpush1.msra.mxu0 %v455
    %1071 = vmatprep.subr.mxu0 %v472
    %1072 = vmatpush1.msra.mxu0 %v471
    %1073 = vmatprep.subr.mxu0 %v563
    %1074 = vmatpush1.msra.mxu0 %v560
    %1075 = vmatprep.subr.mxu0 0.0
    %1076 = vmatpush1.msra.mxu0 0.0
    %1077 = vmatprep.subr.mxu0 0.0
    %1078 = vmatpush1.msra.mxu0 0.0
    %1079 = vmatprep.subr.mxu0 0.0
    %1080 = vmatpush1.msra.mxu0 0.0
    %1081 = vmatprep.subr.mxu0 0.0
    %1082 = vmatpush1.msra.mxu0 0.0
    %1083 = vmatprep.subr.mxu0 0.0
    %1084 = vmatpush1.msra.mxu0 0.0
    %1085 = vmatprep.subr.mxu0 0.0
    %1086 = vmatpush1.msra.mxu0 0.0
    %1087 = vmatprep.subr.mxu0 0.0
    %1088 = vmatpush1.msra.mxu0 0.0
    %1089 = vmatprep.subr.mxu0 0.0
    %1090 = vmatpush1.msra.mxu0 0.0
    %1091 = vmatprep.subr.mxu0 0.0
    %1092 = vmatpush1.msra.mxu0 0.0
    %1093 = vmatprep.subr.mxu0 0.0
    %1094 = vmatpush1.msra.mxu0 0.0
    %1095 = vmatprep.subr.mxu0 0.0
    %1096 = vmatpush1.msra.mxu0 0.0
    %1097 = vmatprep.subr.mxu0 0.0
    %1098 = vmatpush1.msra.mxu0 0.0
    %1099 = vmatprep.subr.mxu0 0.0
    %1100 = vmatpush1.msra.mxu0 0.0
    %1101 = vmatprep.subr.mxu0 0.0
    %1102 = vmatpush1.msra.mxu0 0.0
    %1103 = vmatprep.subr.mxu0 0.0
    %1104 = vmatpush1.msra.mxu0 0.0
    %1105 = vmatprep.subr.mxu0 0.0
    %1106 = vmatpush1.msra.mxu0 0.0
    %1107 = vmatprep.subr.mxu0 0.0
    %1108 = vmatpush1.msra.mxu0 0.0
    %1109 = vmatprep.subr.mxu0 0.0
    %1110 = vmatpush1.msra.mxu0 0.0
    %1111 = vmatprep.subr.mxu0 0.0
    %1112 = vmatpush1.msra.mxu0 0.0
    %1113 = vmatprep.subr.mxu0 0.0
    %1114 = vmatpush1.msra.mxu0 0.0
    %1115 = vmatprep.subr.mxu0 0.0
    %1116 = vmatpush1.msra.mxu0 0.0
    %1117 = vmatprep.subr.mxu0 0.0
    %1118 = vmatpush1.msra.mxu0 0.0
    %1119 = vmatprep.subr.mxu0 0.0
    %1120 = vmatpush1.msra.mxu0 0.0
    %1121 = vmatprep.subr.mxu0 0.0
    %1122 = vmatpush1.msra.mxu0 0.0
    %1123 = vmatprep.subr.mxu0 0.0
    %1124 = vmatpush1.msra.mxu0 0.0
    %1125 = vmatprep.subr.mxu0 0.0
    %1126 = vmatpush1.msra.mxu0 0.0
    %1127 = vmatprep.subr.mxu0 0.0
    %1128 = vmatpush1.msra.mxu0 0.0
    %1129 = vmatprep.subr.mxu0 0.0
    %1130 = vmatpush1.msra.mxu0 0.0
    %1131 = vmatprep.subr.mxu0 0.0
    %1132 = vmatpush1.msra.mxu0 0.0
    %1133 = vmatprep.mubr.f32.mxu0 0.0
    %1134 = vmatmul.mubr.f32.gmra.mrb[0].mxu0 %v514
    %v1135 = vpop.f32.mrb[0].mxu0
    %v1136 = vadd.f32 %v500, %v1135
    %v1137 = vpop.f32.mrb[0].mxu0
    %v1138 = vadd.f32 %v500, %v1137
    %1139 = vmatprep.mubr.f32.mxu0 0.0
    %1140 = vmatmul.mubr.f32.gmra.mrb[0].mxu0 %v517
    %v1141 = vpop.f32.mrb[0].mxu0
    %v1142 = vadd.f32 %v505, %v1141
    %v1143 = vpop.f32.mrb[0].mxu0
    %v1144 = vadd.f32 %v505, %v1143
    %1145 = vmatprep.mubr.f32.mxu0 0.0
    %1146 = vmatmul.mubr.f32.gmra.mrb[0].mxu0 %v520
    %v1147 = vpop.f32.mrb[0].mxu0
    %v1148 = vadd.f32 %v510, %v1147
    %v1149 = vpop.f32.mrb[0].mxu0
    %v1150 = vadd.f32 %v510, %v1149
    %1151 = vdwg.mxu0
    %1152 = vmatprep.subr.mxu0 %v458
    %1153 = vmatpush1.msra.mxu0 %v457
    %1154 = vmatprep.subr.mxu0 %v474
    %1155 = vmatpush1.msra.mxu0 %v473
    %1156 = vmatprep.subr.mxu0 %v569
    %1157 = vmatpush1.msra.mxu0 %v566
    %1158 = vmatprep.subr.mxu0 0.0
    %1159 = vmatpush1.msra.mxu0 0.0
    %1160 = vmatprep.subr.mxu0 0.0
    %1161 = vmatpush1.msra.mxu0 0.0
    %1162 = vmatprep.subr.mxu0 0.0
    %1163 = vmatpush1.msra.mxu0 0.0
    %1164 = vmatprep.subr.mxu0 0.0
    %1165 = vmatpush1.msra.mxu0 0.0
    %1166 = vmatprep.subr.mxu0 0.0
    %1167 = vmatpush1.msra.mxu0 0.0
    %1168 = vmatprep.subr.mxu0 0.0
    %1169 = vmatpush1.msra.mxu0 0.0
    %1170 = vmatprep.subr.mxu0 0.0
    %1171 = vmatpush1.msra.mxu0 0.0
    %1172 = vmatprep.subr.mxu0 0.0
    %1173 = vmatpush1.msra.mxu0 0.0
    %1174 = vmatprep.subr.mxu0 0.0
    %1175 = vmatpush1.msra.mxu0 0.0
    %1176 = vmatprep.subr.mxu0 0.0
    %1177 = vmatpush1.msra.mxu0 0.0
    %1178 = vmatprep.subr.mxu0 0.0
    %1179 = vmatpush1.msra.mxu0 0.0
    %1180 = vmatprep.subr.mxu0 0.0
    %1181 = vmatpush1.msra.mxu0 0.0
    %1182 = vmatprep.subr.mxu0 0.0
    %1183 = vmatpush1.msra.mxu0 0.0
    %1184 = vmatprep.subr.mxu0 0.0
    %1185 = vmatpush1.msra.mxu0 0.0
    %1186 = vmatprep.subr.mxu0 0.0
    %1187 = vmatpush1.msra.mxu0 0.0
    %1188 = vmatprep.subr.mxu0 0.0
    %1189 = vmatpush1.msra.mxu0 0.0
    %1190 = vmatprep.subr.mxu0 0.0
    %1191 = vmatpush1.msra.mxu0 0.0
    %1192 = vmatprep.subr.mxu0 0.0
    %1193 = vmatpush1.msra.mxu0 0.0
    %1194 = vmatprep.subr.mxu0 0.0
    %1195 = vmatpush1.msra.mxu0 0.0
    %1196 = vmatprep.subr.mxu0 0.0
    %1197 = vmatpush1.msra.mxu0 0.0
    %1198 = vmatprep.subr.mxu0 0.0
    %1199 = vmatpush1.msra.mxu0 0.0
    %1200 = vmatprep.subr.mxu0 0.0
    %1201 = vmatpush1.msra.mxu0 0.0
    %1202 = vmatprep.subr.mxu0 0.0
    %1203 = vmatpush1.msra.mxu0 0.0
    %1204 = vmatprep.subr.mxu0 0.0
    %1205 = vmatpush1.msra.mxu0 0.0
    %1206 = vmatprep.subr.mxu0 0.0
    %1207 = vmatpush1.msra.mxu0 0.0
    %1208 = vmatprep.subr.mxu0 0.0
    %1209 = vmatpush1.msra.mxu0 0.0
    %1210 = vmatprep.subr.mxu0 0.0
    %1211 = vmatpush1.msra.mxu0 0.0
    %1212 = vmatprep.subr.mxu0 0.0
    %1213 = vmatpush1.msra.mxu0 0.0
    %1214 = vmatprep.subr.mxu0 0.0
    %1215 = vmatpush1.msra.mxu0 0.0
    %1216 = vmatprep.mubr.f32.mxu0 0.0
    %1217 = vmatmul.mubr.f32.gmra.mrb[0].mxu0 %v514
    %v1218 = vpop.f32.mrb[0].mxu0
    %v1219 = vadd.f32 %v500, %v1218
    %v1220 = vpop.f32.mrb[0].mxu0
    %v1221 = vadd.f32 %v500, %v1220
    %1222 = vmatprep.mubr.f32.mxu0 0.0
    %1223 = vmatmul.mubr.f32.gmra.mrb[0].mxu0 %v517
    %v1224 = vpop.f32.mrb[0].mxu0
    %v1225 = vadd.f32 %v505, %v1224
    %v1226 = vpop.f32.mrb[0].mxu0
    %v1227 = vadd.f32 %v505, %v1226
    %1228 = vmatprep.mubr.f32.mxu0 0.0
    %1229 = vmatmul.mubr.f32.gmra.mrb[0].mxu0 %v520
    %v1230 = vpop.f32.mrb[0].mxu0
    %v1231 = vadd.f32 %v510, %v1230
    %v1232 = vpop.f32.mrb[0].mxu0
    %v1233 = vadd.f32 %v510, %v1232
    %1234 = vdwg.mxu0
    %v1235 = vtanh.pop %v638
    %v1236 = vtanh.pop %v640
    %v1237 = vtanh.pop %v721
    %v1238 = vtanh.pop %v723
    %v1239 = vtanh.pop %v804
    %v1240 = vtanh.pop %v806
    %v1241 = vtanh.pop %v887
    %v1242 = vtanh.pop %v889
    %v1243 = vtanh.pop %v970
    %v1244 = vtanh.pop %v972
    %v1245 = vtanh.pop %v1053
    %v1246 = vtanh.pop %v1055
    %v1247 = vtanh.pop %v1136
    %v1248 = vtanh.pop %v1138
    %v1249 = vtanh.pop %v1219
    %v1250 = vtanh.pop %v1221
    %v1251 = vtanh.pop %v644
    %v1252 = vtanh.pop %v646
    %v1253 = vtanh.pop %v727
    %v1254 = vtanh.pop %v729
    %v1255 = vtanh.pop %v810
    %v1256 = vtanh.pop %v812
    %v1257 = vtanh.pop %v893
    %v1258 = vtanh.pop %v895
    %v1259 = vtanh.pop %v976
    %v1260 = vtanh.pop %v978
    %v1261 = vtanh.pop %v1059
    %v1262 = vtanh.pop %v1061
    %v1263 = vtanh.pop %v1142
    %v1264 = vtanh.pop %v1144
    %v1265 = vtanh.pop %v1225
    %v1266 = vtanh.pop %v1227
    %v1267 = vtanh.pop %v650
    %v1268 = vtanh.pop %v652
    %v1269 = vtanh.pop %v733
    %v1270 = vtanh.pop %v735
    %v1271 = vtanh.pop %v816
    %v1272 = vtanh.pop %v818
    %v1273 = vtanh.pop %v899
    %v1274 = vtanh.pop %v901
    %v1275 = vtanh.pop %v982
    %v1276 = vtanh.pop %v984
    %v1277 = vtanh.pop %v1065
    %v1278 = vtanh.pop %v1067
    %v1279 = vtanh.pop %v1148
    %v1280 = vtanh.pop %v1150
    %v1281 = vtanh.pop %v1231
    %v1282 = vtanh.pop %v1233
    %v1283 = vld [vmem:[%s5] sm:$0xff]
    %v1284 = vld [vmem:[%s5 + $0x8] sm:$0xff]
    %v1285 = vld [vmem:[%s5 + $0x10] sm:$0xf]
    %v1286 = vld [vmem:[%s6] sm:$0xff]
    %v1287 = vld [vmem:[%s6 + $0x8] sm:$0xff]
    %v1288 = vld [vmem:[%s6 + $0x10] sm:$0xf]
    %1290 = vset.pattern.permute.xlu0 0
    %1291 = vperm.xlu0 %1290, %v1286
    %v1292 = vpop.permute.xlu0 %1291
    %1295 = vset.pattern.permute.xlu0 0
    %1296 = vperm.xlu0 %1295, %v1287
    %v1297 = vpop.permute.xlu0 %1296
    %1300 = vset.pattern.permute.xlu0 0
    %1301 = vperm.xlu0 %1300, %v1288
    %v1302 = vpop.permute.xlu0 %1301
    %v1305 = vsel %vm512, %v1283, 0
    %v1308 = vsel %vm512, %v1284, 0
    %v1311 = vsel %vm512, %v1285, 0
    %v1314 = vsel %vm522, %v1267, 0
    %v1317 = vsel %vm522, %v1268, 0
    %v1320 = vsel %vm522, %v1269, 0
    %v1323 = vsel %vm522, %v1270, 0
    %v1326 = vsel %vm522, %v1271, 0
    %v1329 = vsel %vm522, %v1272, 0
    %v1332 = vsel %vm522, %v1273, 0
    %v1335 = vsel %vm522, %v1274, 0
    %v1338 = vsel %vm522, %v1275, 0
    %v1341 = vsel %vm522, %v1276, 0
    %v1344 = vsel %vm522, %v1277, 0
    %v1347 = vsel %vm522, %v1278, 0
    %v1350 = vsel %vm522, %v1279, 0
    %v1353 = vsel %vm522, %v1280, 0
    %v1356 = vsel %vm522, %v1281, 0
    %v1359 = vsel %vm522, %v1282, 0
    %1361 = vmatprep.subr.mxu0 %v1236
    %1362 = vmatpush1.msra.mxu0 %v1235
    %1363 = vmatprep.subr.mxu0 %v1252
    %1364 = vmatpush1.msra.mxu0 %v1251
    %1365 = vmatprep.subr.mxu0 %v1317
    %1366 = vmatpush1.msra.mxu0 %v1314
    %1367 = vmatprep.subr.mxu0 0.0
    %1368 = vmatpush1.msra.mxu0 0.0
    %1369 = vmatprep.subr.mxu0 0.0
    %1370 = vmatpush1.msra.mxu0 0.0
    %1371 = vmatprep.subr.mxu0 0.0
    %1372 = vmatpush1.msra.mxu0 0.0
    %1373 = vmatprep.subr.mxu0 0.0
    %1374 = vmatpush1.msra.mxu0 0.0
    %1375 = vmatprep.subr.mxu0 0.0
    %1376 = vmatpush1.msra.mxu0 0.0
    %1377 = vmatprep.subr.mxu0 0.0
    %1378 = vmatpush1.msra.mxu0 0.0
    %1379 = vmatprep.subr.mxu0 0.0
    %1380 = vmatpush1.msra.mxu0 0.0
    %1381 = vmatprep.subr.mxu0 0.0
    %1382 = vmatpush1.msra.mxu0 0.0
    %1383 = vmatprep.subr.mxu0 0.0
    %1384 = vmatpush1.msra.mxu0 0.0
    %1385 = vmatprep.subr.mxu0 0.0
    %1386 = vmatpush1.msra.mxu0 0.0
    %1387 = vmatprep.subr.mxu0 0.0
    %1388 = vmatpush1.msra.mxu0 0.0
    %1389 = vmatprep.subr.mxu0 0.0
    %1390 = vmatpush1.msra.mxu0 0.0
    %1391 = vmatprep.subr.mxu0 0.0
    %1392 = vmatpush1.msra.mxu0 0.0
    %1393 = vmatprep.subr.mxu0 0.0
    %1394 = vmatpush1.msra.mxu0 0.0
    %1395 = vmatprep.subr.mxu0 0.0
    %1396 = vmatpush1.msra.mxu0 0.0
    %1397 = vmatprep.subr.mxu0 0.0
    %1398 = vmatpush1.msra.mxu0 0.0
    %1399 = vmatprep.subr.mxu0 0.0
    %1400 = vmatpush1.msra.mxu0 0.0
    %1401 = vmatprep.subr.mxu0 0.0
    %1402 = vmatpush1.msra.mxu0 0.0
    %1403 = vmatprep.subr.mxu0 0.0
    %1404 = vmatpush1.msra.mxu0 0.0
    %1405 = vmatprep.subr.mxu0 0.0
    %1406 = vmatpush1.msra.mxu0 0.0
    %1407 = vmatprep.subr.mxu0 0.0
    %1408 = vmatpush1.msra.mxu0 0.0
    %1409 = vmatprep.subr.mxu0 0.0
    %1410 = vmatpush1.msra.mxu0 0.0
    %1411 = vmatprep.subr.mxu0 0.0
    %1412 = vmatpush1.msra.mxu0 0.0
    %1413 = vmatprep.subr.mxu0 0.0
    %1414 = vmatpush1.msra.mxu0 0.0
    %1415 = vmatprep.subr.mxu0 0.0
    %1416 = vmatpush1.msra.mxu0 0.0
    %1417 = vmatprep.subr.mxu0 0.0
    %1418 = vmatpush1.msra.mxu0 0.0
    %1419 = vmatprep.subr.mxu0 0.0
    %1420 = vmatpush1.msra.mxu0 0.0
    %1421 = vmatprep.subr.mxu0 0.0
    %1422 = vmatpush1.msra.mxu0 0.0
    %1423 = vmatprep.subr.mxu0 0.0
    %1424 = vmatpush1.msra.mxu0 0.0
    %1425 = vmatprep.mubr.f32.mxu0 0.0
    %1426 = vmatmul.mubr.f32.gmra.mrb[0].mxu0 %v1305
    %v1427 = vpop.f32.mrb[0].mxu0
    %v1428 = vadd.f32 %v1292, %v1427
    %v1429 = vpop.f32.mrb[0].mxu0
    %v1430 = vadd.f32 %v1292, %v1429
    %1431 = vmatprep.mubr.f32.mxu0 0.0
    %1432 = vmatmul.mubr.f32.gmra.mrb[0].mxu0 %v1308
    %v1433 = vpop.f32.mrb[0].mxu0
    %v1434 = vadd.f32 %v1297, %v1433
    %v1435 = vpop.f32.mrb[0].mxu0
    %v1436 = vadd.f32 %v1297, %v1435
    %1437 = vmatprep.mubr.f32.mxu0 0.0
    %1438 = vmatmul.mubr.f32.gmra.mrb[0].mxu0 %v1311
    %v1439 = vpop.f32.mrb[0].mxu0
    %v1440 = vadd.f32 %v1302, %v1439
    %v1441 = vpop.f32.mrb[0].mxu0
    %v1442 = vadd.f32 %v1302, %v1441
    %1443 = vdwg.mxu0
    %1444 = vmatprep.subr.mxu0 %v1238
    %1445 = vmatpush1.msra.mxu0 %v1237
    %1446 = vmatprep.subr.mxu0 %v1254
    %1447 = vmatpush1.msra.mxu0 %v1253
    %1448 = vmatprep.subr.mxu0 %v1323
    %1449 = vmatpush1.msra.mxu0 %v1320
    %1450 = vmatprep.subr.mxu0 0.0
    %1451 = vmatpush1.msra.mxu0 0.0
    %1452 = vmatprep.subr.mxu0 0.0
    %1453 = vmatpush1.msra.mxu0 0.0
    %1454 = vmatprep.subr.mxu0 0.0
    %1455 = vmatpush1.msra.mxu0 0.0
    %1456 = vmatprep.subr.mxu0 0.0
    %1457 = vmatpush1.msra.mxu0 0.0
    %1458 = vmatprep.subr.mxu0 0.0
    %1459 = vmatpush1.msra.mxu0 0.0
    %1460 = vmatprep.subr.mxu0 0.0
    %1461 = vmatpush1.msra.mxu0 0.0
    %1462 = vmatprep.subr.mxu0 0.0
    %1463 = vmatpush1.msra.mxu0 0.0
    %1464 = vmatprep.subr.mxu0 0.0
    %1465 = vmatpush1.msra.mxu0 0.0
    %1466 = vmatprep.subr.mxu0 0.0
    %1467 = vmatpush1.msra.mxu0 0.0
    %1468 = vmatprep.subr.mxu0 0.0
    %1469 = vmatpush1.msra.mxu0 0.0
    %1470 = vmatprep.subr.mxu0 0.0
    %1471 = vmatpush1.msra.mxu0 0.0
    %1472 = vmatprep.subr.mxu0 0.0
    %1473 = vmatpush1.msra.mxu0 0.0
    %1474 = vmatprep.subr.mxu0 0.0
    %1475 = vmatpush1.msra.mxu0 0.0
    %1476 = vmatprep.subr.mxu0 0.0
    %1477 = vmatpush1.msra.mxu0 0.0
    %1478 = vmatprep.subr.mxu0 0.0
    %1479 = vmatpush1.msra.mxu0 0.0
    %1480 = vmatprep.subr.mxu0 0.0
    %1481 = vmatpush1.msra.mxu0 0.0
    %1482 = vmatprep.subr.mxu0 0.0
    %1483 = vmatpush1.msra.mxu0 0.0
    %1484 = vmatprep.subr.mxu0 0.0
    %1485 = vmatpush1.msra.mxu0 0.0
    %1486 = vmatprep.subr.mxu0 0.0
    %1487 = vmatpush1.msra.mxu0 0.0
    %1488 = vmatprep.subr.mxu0 0.0
    %1489 = vmatpush1.msra.mxu0 0.0
    %1490 = vmatprep.subr.mxu0 0.0
    %1491 = vmatpush1.msra.mxu0 0.0
    %1492 = vmatprep.subr.mxu0 0.0
    %1493 = vmatpush1.msra.mxu0 0.0
    %1494 = vmatprep.subr.mxu0 0.0
    %1495 = vmatpush1.msra.mxu0 0.0
    %1496 = vmatprep.subr.mxu0 0.0
    %1497 = vmatpush1.msra.mxu0 0.0
    %1498 = vmatprep.subr.mxu0 0.0
    %1499 = vmatpush1.msra.mxu0 0.0
    %1500 = vmatprep.subr.mxu0 0.0
    %1501 = vmatpush1.msra.mxu0 0.0
    %1502 = vmatprep.subr.mxu0 0.0
    %1503 = vmatpush1.msra.mxu0 0.0
    %1504 = vmatprep.subr.mxu0 0.0
    %1505 = vmatpush1.msra.mxu0 0.0
    %1506 = vmatprep.subr.mxu0 0.0
    %1507 = vmatpush1.msra.mxu0 0.0
    %1508 = vmatprep.mubr.f32.mxu0 0.0
    %1509 = vmatmul.mubr.f32.gmra.mrb[0].mxu0 %v1305
    %v1510 = vpop.f32.mrb[0].mxu0
    %v1511 = vadd.f32 %v1292, %v1510
    %v1512 = vpop.f32.mrb[0].mxu0
    %v1513 = vadd.f32 %v1292, %v1512
    %1514 = vmatprep.mubr.f32.mxu0 0.0
    %1515 = vmatmul.mubr.f32.gmra.mrb[0].mxu0 %v1308
    %v1516 = vpop.f32.mrb[0].mxu0
    %v1517 = vadd.f32 %v1297, %v1516
    %v1518 = vpop.f32.mrb[0].mxu0
    %v1519 = vadd.f32 %v1297, %v1518
    %1520 = vmatprep.mubr.f32.mxu0 0.0
    %1521 = vmatmul.mubr.f32.gmra.mrb[0].mxu0 %v1311
    %v1522 = vpop.f32.mrb[0].mxu0
    %v1523 = vadd.f32 %v1302, %v1522
    %v1524 = vpop.f32.mrb[0].mxu0
    %v1525 = vadd.f32 %v1302, %v1524
    %1526 = vdwg.mxu0
    %1527 = vmatprep.subr.mxu0 %v1240
    %1528 = vmatpush1.msra.mxu0 %v1239
    %1529 = vmatprep.subr.mxu0 %v1256
    %1530 = vmatpush1.msra.mxu0 %v1255
    %1531 = vmatprep.subr.mxu0 %v1329
    %1532 = vmatpush1.msra.mxu0 %v1326
    %1533 = vmatprep.subr.mxu0 0.0
    %1534 = vmatpush1.msra.mxu0 0.0
    %1535 = vmatprep.subr.mxu0 0.0
    %1536 = vmatpush1.msra.mxu0 0.0
    %1537 = vmatprep.subr.mxu0 0.0
    %1538 = vmatpush1.msra.mxu0 0.0
    %1539 = vmatprep.subr.mxu0 0.0
    %1540 = vmatpush1.msra.mxu0 0.0
    %1541 = vmatprep.subr.mxu0 0.0
    %1542 = vmatpush1.msra.mxu0 0.0
    %1543 = vmatprep.subr.mxu0 0.0
    %1544 = vmatpush1.msra.mxu0 0.0
    %1545 = vmatprep.subr.mxu0 0.0
    %1546 = vmatpush1.msra.mxu0 0.0
    %1547 = vmatprep.subr.mxu0 0.0
    %1548 = vmatpush1.msra.mxu0 0.0
    %1549 = vmatprep.subr.mxu0 0.0
    %1550 = vmatpush1.msra.mxu0 0.0
    %1551 = vmatprep.subr.mxu0 0.0
    %1552 = vmatpush1.msra.mxu0 0.0
    %1553 = vmatprep.subr.mxu0 0.0
    %1554 = vmatpush1.msra.mxu0 0.0
    %1555 = vmatprep.subr.mxu0 0.0
    %1556 = vmatpush1.msra.mxu0 0.0
    %1557 = vmatprep.subr.mxu0 0.0
    %1558 = vmatpush1.msra.mxu0 0.0
    %1559 = vmatprep.subr.mxu0 0.0
    %1560 = vmatpush1.msra.mxu0 0.0
    %1561 = vmatprep.subr.mxu0 0.0
    %1562 = vmatpush1.msra.mxu0 0.0
    %1563 = vmatprep.subr.mxu0 0.0
    %1564 = vmatpush1.msra.mxu0 0.0
    %1565 = vmatprep.subr.mxu0 0.0
    %1566 = vmatpush1.msra.mxu0 0.0
    %1567 = vmatprep.subr.mxu0 0.0
    %1568 = vmatpush1.msra.mxu0 0.0
    %1569 = vmatprep.subr.mxu0 0.0
    %1570 = vmatpush1.msra.mxu0 0.0
    %1571 = vmatprep.subr.mxu0 0.0
    %1572 = vmatpush1.msra.mxu0 0.0
    %1573 = vmatprep.subr.mxu0 0.0
    %1574 = vmatpush1.msra.mxu0 0.0
    %1575 = vmatprep.subr.mxu0 0.0
    %1576 = vmatpush1.msra.mxu0 0.0
    %1577 = vmatprep.subr.mxu0 0.0
    %1578 = vmatpush1.msra.mxu0 0.0
    %1579 = vmatprep.subr.mxu0 0.0
    %1580 = vmatpush1.msra.mxu0 0.0
    %1581 = vmatprep.subr.mxu0 0.0
    %1582 = vmatpush1.msra.mxu0 0.0
    %1583 = vmatprep.subr.mxu0 0.0
    %1584 = vmatpush1.msra.mxu0 0.0
    %1585 = vmatprep.subr.mxu0 0.0
    %1586 = vmatpush1.msra.mxu0 0.0
    %1587 = vmatprep.subr.mxu0 0.0
    %1588 = vmatpush1.msra.mxu0 0.0
    %1589 = vmatprep.subr.mxu0 0.0
    %1590 = vmatpush1.msra.mxu0 0.0
    %1591 = vmatprep.mubr.f32.mxu0 0.0
    %1592 = vmatmul.mubr.f32.gmra.mrb[0].mxu0 %v1305
    %v1593 = vpop.f32.mrb[0].mxu0
    %v1594 = vadd.f32 %v1292, %v1593
    %v1595 = vpop.f32.mrb[0].mxu0
    %v1596 = vadd.f32 %v1292, %v1595
    %1597 = vmatprep.mubr.f32.mxu0 0.0
    %1598 = vmatmul.mubr.f32.gmra.mrb[0].mxu0 %v1308
    %v1599 = vpop.f32.mrb[0].mxu0
    %v1600 = vadd.f32 %v1297, %v1599
    %v1601 = vpop.f32.mrb[0].mxu0
    %v1602 = vadd.f32 %v1297, %v1601
    %1603 = vmatprep.mubr.f32.mxu0 0.0
    %1604 = vmatmul.mubr.f32.gmra.mrb[0].mxu0 %v1311
    %v1605 = vpop.f32.mrb[0].mxu0
    %v1606 = vadd.f32 %v1302, %v1605
    %v1607 = vpop.f32.mrb[0].mxu0
    %v1608 = vadd.f32 %v1302, %v1607
    %1609 = vdwg.mxu0
    %1610 = vmatprep.subr.mxu0 %v1242
    %1611 = vmatpush1.msra.mxu0 %v1241
    %1612 = vmatprep.subr.mxu0 %v1258
    %1613 = vmatpush1.msra.mxu0 %v1257
    %1614 = vmatprep.subr.mxu0 %v1335
    %1615 = vmatpush1.msra.mxu0 %v1332
    %1616 = vmatprep.subr.mxu0 0.0
    %1617 = vmatpush1.msra.mxu0 0.0
    %1618 = vmatprep.subr.mxu0 0.0
    %1619 = vmatpush1.msra.mxu0 0.0
    %1620 = vmatprep.subr.mxu0 0.0
    %1621 = vmatpush1.msra.mxu0 0.0
    %1622 = vmatprep.subr.mxu0 0.0
    %1623 = vmatpush1.msra.mxu0 0.0
    %1624 = vmatprep.subr.mxu0 0.0
    %1625 = vmatpush1.msra.mxu0 0.0
    %1626 = vmatprep.subr.mxu0 0.0
    %1627 = vmatpush1.msra.mxu0 0.0
    %1628 = vmatprep.subr.mxu0 0.0
    %1629 = vmatpush1.msra.mxu0 0.0
    %1630 = vmatprep.subr.mxu0 0.0
    %1631 = vmatpush1.msra.mxu0 0.0
    %1632 = vmatprep.subr.mxu0 0.0
    %1633 = vmatpush1.msra.mxu0 0.0
    %1634 = vmatprep.subr.mxu0 0.0
    %1635 = vmatpush1.msra.mxu0 0.0
    %1636 = vmatprep.subr.mxu0 0.0
    %1637 = vmatpush1.msra.mxu0 0.0
    %1638 = vmatprep.subr.mxu0 0.0
    %1639 = vmatpush1.msra.mxu0 0.0
    %1640 = vmatprep.subr.mxu0 0.0
    %1641 = vmatpush1.msra.mxu0 0.0
    %1642 = vmatprep.subr.mxu0 0.0
    %1643 = vmatpush1.msra.mxu0 0.0
    %1644 = vmatprep.subr.mxu0 0.0
    %1645 = vmatpush1.msra.mxu0 0.0
    %1646 = vmatprep.subr.mxu0 0.0
    %1647 = vmatpush1.msra.mxu0 0.0
    %1648 = vmatprep.subr.mxu0 0.0
    %1649 = vmatpush1.msra.mxu0 0.0
    %1650 = vmatprep.subr.mxu0 0.0
    %1651 = vmatpush1.msra.mxu0 0.0
    %1652 = vmatprep.subr.mxu0 0.0
    %1653 = vmatpush1.msra.mxu0 0.0
    %1654 = vmatprep.subr.mxu0 0.0
    %1655 = vmatpush1.msra.mxu0 0.0
    %1656 = vmatprep.subr.mxu0 0.0
    %1657 = vmatpush1.msra.mxu0 0.0
    %1658 = vmatprep.subr.mxu0 0.0
    %1659 = vmatpush1.msra.mxu0 0.0
    %1660 = vmatprep.subr.mxu0 0.0
    %1661 = vmatpush1.msra.mxu0 0.0
    %1662 = vmatprep.subr.mxu0 0.0
    %1663 = vmatpush1.msra.mxu0 0.0
    %1664 = vmatprep.subr.mxu0 0.0
    %1665 = vmatpush1.msra.mxu0 0.0
    %1666 = vmatprep.subr.mxu0 0.0
    %1667 = vmatpush1.msra.mxu0 0.0
    %1668 = vmatprep.subr.mxu0 0.0
    %1669 = vmatpush1.msra.mxu0 0.0
    %1670 = vmatprep.subr.mxu0 0.0
    %1671 = vmatpush1.msra.mxu0 0.0
    %1672 = vmatprep.subr.mxu0 0.0
    %1673 = vmatpush1.msra.mxu0 0.0
    %1674 = vmatprep.mubr.f32.mxu0 0.0
    %1675 = vmatmul.mubr.f32.gmra.mrb[0].mxu0 %v1305
    %v1676 = vpop.f32.mrb[0].mxu0
    %v1677 = vadd.f32 %v1292, %v1676
    %v1678 = vpop.f32.mrb[0].mxu0
    %v1679 = vadd.f32 %v1292, %v1678
    %1680 = vmatprep.mubr.f32.mxu0 0.0
    %1681 = vmatmul.mubr.f32.gmra.mrb[0].mxu0 %v1308
    %v1682 = vpop.f32.mrb[0].mxu0
    %v1683 = vadd.f32 %v1297, %v1682
    %v1684 = vpop.f32.mrb[0].mxu0
    %v1685 = vadd.f32 %v1297, %v1684
    %1686 = vmatprep.mubr.f32.mxu0 0.0
    %1687 = vmatmul.mubr.f32.gmra.mrb[0].mxu0 %v1311
    %v1688 = vpop.f32.mrb[0].mxu0
    %v1689 = vadd.f32 %v1302, %v1688
    %v1690 = vpop.f32.mrb[0].mxu0
    %v1691 = vadd.f32 %v1302, %v1690
    %1692 = vdwg.mxu0
    %1693 = vmatprep.subr.mxu0 %v1244
    %1694 = vmatpush1.msra.mxu0 %v1243
    %1695 = vmatprep.subr.mxu0 %v1260
    %1696 = vmatpush1.msra.mxu0 %v1259
    %1697 = vmatprep.subr.mxu0 %v1341
    %1698 = vmatpush1.msra.mxu0 %v1338
    %1699 = vmatprep.subr.mxu0 0.0
    %1700 = vmatpush1.msra.mxu0 0.0
    %1701 = vmatprep.subr.mxu0 0.0
    %1702 = vmatpush1.msra.mxu0 0.0
    %1703 = vmatprep.subr.mxu0 0.0
    %1704 = vmatpush1.msra.mxu0 0.0
    %1705 = vmatprep.subr.mxu0 0.0
    %1706 = vmatpush1.msra.mxu0 0.0
    %1707 = vmatprep.subr.mxu0 0.0
    %1708 = vmatpush1.msra.mxu0 0.0
    %1709 = vmatprep.subr.mxu0 0.0
    %1710 = vmatpush1.msra.mxu0 0.0
    %1711 = vmatprep.subr.mxu0 0.0
    %1712 = vmatpush1.msra.mxu0 0.0
    %1713 = vmatprep.subr.mxu0 0.0
    %1714 = vmatpush1.msra.mxu0 0.0
    %1715 = vmatprep.subr.mxu0 0.0
    %1716 = vmatpush1.msra.mxu0 0.0
    %1717 = vmatprep.subr.mxu0 0.0
    %1718 = vmatpush1.msra.mxu0 0.0
    %1719 = vmatprep.subr.mxu0 0.0
    %1720 = vmatpush1.msra.mxu0 0.0
    %1721 = vmatprep.subr.mxu0 0.0
    %1722 = vmatpush1.msra.mxu0 0.0
    %1723 = vmatprep.subr.mxu0 0.0
    %1724 = vmatpush1.msra.mxu0 0.0
    %1725 = vmatprep.subr.mxu0 0.0
    %1726 = vmatpush1.msra.mxu0 0.0
    %1727 = vmatprep.subr.mxu0 0.0
    %1728 = vmatpush1.msra.mxu0 0.0
    %1729 = vmatprep.subr.mxu0 0.0
    %1730 = vmatpush1.msra.mxu0 0.0
    %1731 = vmatprep.subr.mxu0 0.0
    %1732 = vmatpush1.msra.mxu0 0.0
    %1733 = vmatprep.subr.mxu0 0.0
    %1734 = vmatpush1.msra.mxu0 0.0
    %1735 = vmatprep.subr.mxu0 0.0
    %1736 = vmatpush1.msra.mxu0 0.0
    %1737 = vmatprep.subr.mxu0 0.0
    %1738 = vmatpush1.msra.mxu0 0.0
    %1739 = vmatprep.subr.mxu0 0.0
    %1740 = vmatpush1.msra.mxu0 0.0
    %1741 = vmatprep.subr.mxu0 0.0
    %1742 = vmatpush1.msra.mxu0 0.0
    %1743 = vmatprep.subr.mxu0 0.0
    %1744 = vmatpush1.msra.mxu0 0.0
    %1745 = vmatprep.subr.mxu0 0.0
    %1746 = vmatpush1.msra.mxu0 0.0
    %1747 = vmatprep.subr.mxu0 0.0
    %1748 = vmatpush1.msra.mxu0 0.0
    %1749 = vmatprep.subr.mxu0 0.0
    %1750 = vmatpush1.msra.mxu0 0.0
    %1751 = vmatprep.subr.mxu0 0.0
    %1752 = vmatpush1.msra.mxu0 0.0
    %1753 = vmatprep.subr.mxu0 0.0
    %1754 = vmatpush1.msra.mxu0 0.0
    %1755 = vmatprep.subr.mxu0 0.0
    %1756 = vmatpush1.msra.mxu0 0.0
    %1757 = vmatprep.mubr.f32.mxu0 0.0
    %1758 = vmatmul.mubr.f32.gmra.mrb[0].mxu0 %v1305
    %v1759 = vpop.f32.mrb[0].mxu0
    %v1760 = vadd.f32 %v1292, %v1759
    %v1761 = vpop.f32.mrb[0].mxu0
    %v1762 = vadd.f32 %v1292, %v1761
    %1763 = vmatprep.mubr.f32.mxu0 0.0
    %1764 = vmatmul.mubr.f32.gmra.mrb[0].mxu0 %v1308
    %v1765 = vpop.f32.mrb[0].mxu0
    %v1766 = vadd.f32 %v1297, %v1765
    %v1767 = vpop.f32.mrb[0].mxu0
    %v1768 = vadd.f32 %v1297, %v1767
    %1769 = vmatprep.mubr.f32.mxu0 0.0
    %1770 = vmatmul.mubr.f32.gmra.mrb[0].mxu0 %v1311
    %v1771 = vpop.f32.mrb[0].mxu0
    %v1772 = vadd.f32 %v1302, %v1771
    %v1773 = vpop.f32.mrb[0].mxu0
    %v1774 = vadd.f32 %v1302, %v1773
    %1775 = vdwg.mxu0
    %1776 = vmatprep.subr.mxu0 %v1246
    %1777 = vmatpush1.msra.mxu0 %v1245
    %1778 = vmatprep.subr.mxu0 %v1262
    %1779 = vmatpush1.msra.mxu0 %v1261
    %1780 = vmatprep.subr.mxu0 %v1347
    %1781 = vmatpush1.msra.mxu0 %v1344
    %1782 = vmatprep.subr.mxu0 0.0
    %1783 = vmatpush1.msra.mxu0 0.0
    %1784 = vmatprep.subr.mxu0 0.0
    %1785 = vmatpush1.msra.mxu0 0.0
    %1786 = vmatprep.subr.mxu0 0.0
    %1787 = vmatpush1.msra.mxu0 0.0
    %1788 = vmatprep.subr.mxu0 0.0
    %1789 = vmatpush1.msra.mxu0 0.0
    %1790 = vmatprep.subr.mxu0 0.0
    %1791 = vmatpush1.msra.mxu0 0.0
    %1792 = vmatprep.subr.mxu0 0.0
    %1793 = vmatpush1.msra.mxu0 0.0
    %1794 = vmatprep.subr.mxu0 0.0
    %1795 = vmatpush1.msra.mxu0 0.0
    %1796 = vmatprep.subr.mxu0 0.0
    %1797 = vmatpush1.msra.mxu0 0.0
    %1798 = vmatprep.subr.mxu0 0.0
    %1799 = vmatpush1.msra.mxu0 0.0
    %1800 = vmatprep.subr.mxu0 0.0
    %1801 = vmatpush1.msra.mxu0 0.0
    %1802 = vmatprep.subr.mxu0 0.0
    %1803 = vmatpush1.msra.mxu0 0.0
    %1804 = vmatprep.subr.mxu0 0.0
    %1805 = vmatpush1.msra.mxu0 0.0
    %1806 = vmatprep.subr.mxu0 0.0
    %1807 = vmatpush1.msra.mxu0 0.0
    %1808 = vmatprep.subr.mxu0 0.0
    %1809 = vmatpush1.msra.mxu0 0.0
    %1810 = vmatprep.subr.mxu0 0.0
    %1811 = vmatpush1.msra.mxu0 0.0
    %1812 = vmatprep.subr.mxu0 0.0
    %1813 = vmatpush1.msra.mxu0 0.0
    %1814 = vmatprep.subr.mxu0 0.0
    %1815 = vmatpush1.msra.mxu0 0.0
    %1816 = vmatprep.subr.mxu0 0.0
    %1817 = vmatpush1.msra.mxu0 0.0
    %1818 = vmatprep.subr.mxu0 0.0
    %1819 = vmatpush1.msra.mxu0 0.0
    %1820 = vmatprep.subr.mxu0 0.0
    %1821 = vmatpush1.msra.mxu0 0.0
    %1822 = vmatprep.subr.mxu0 0.0
    %1823 = vmatpush1.msra.mxu0 0.0
    %1824 = vmatprep.subr.mxu0 0.0
    %1825 = vmatpush1.msra.mxu0 0.0
    %1826 = vmatprep.subr.mxu0 0.0
    %1827 = vmatpush1.msra.mxu0 0.0
    %1828 = vmatprep.subr.mxu0 0.0
    %1829 = vmatpush1.msra.mxu0 0.0
    %1830 = vmatprep.subr.mxu0 0.0
    %1831 = vmatpush1.msra.mxu0 0.0
    %1832 = vmatprep.subr.mxu0 0.0
    %1833 = vmatpush1.msra.mxu0 0.0
    %1834 = vmatprep.subr.mxu0 0.0
    %1835 = vmatpush1.msra.mxu0 0.0
    %1836 = vmatprep.subr.mxu0 0.0
    %1837 = vmatpush1.msra.mxu0 0.0
    %1838 = vmatprep.subr.mxu0 0.0
    %1839 = vmatpush1.msra.mxu0 0.0
    %1840 = vmatprep.mubr.f32.mxu0 0.0
    %1841 = vmatmul.mubr.f32.gmra.mrb[0].mxu0 %v1305
    %v1842 = vpop.f32.mrb[0].mxu0
    %v1843 = vadd.f32 %v1292, %v1842
    %v1844 = vpop.f32.mrb[0].mxu0
    %v1845 = vadd.f32 %v1292, %v1844
    %1846 = vmatprep.mubr.f32.mxu0 0.0
    %1847 = vmatmul.mubr.f32.gmra.mrb[0].mxu0 %v1308
    %v1848 = vpop.f32.mrb[0].mxu0
    %v1849 = vadd.f32 %v1297, %v1848
    %v1850 = vpop.f32.mrb[0].mxu0
    %v1851 = vadd.f32 %v1297, %v1850
    %1852 = vmatprep.mubr.f32.mxu0 0.0
    %1853 = vmatmul.mubr.f32.gmra.mrb[0].mxu0 %v1311
    %v1854 = vpop.f32.mrb[0].mxu0
    %v1855 = vadd.f32 %v1302, %v1854
    %v1856 = vpop.f32.mrb[0].mxu0
    %v1857 = vadd.f32 %v1302, %v1856
    %1858 = vdwg.mxu0
    %1859 = vmatprep.subr.mxu0 %v1248
    %1860 = vmatpush1.msra.mxu0 %v1247
    %1861 = vmatprep.subr.mxu0 %v1264
    %1862 = vmatpush1.msra.mxu0 %v1263
    %1863 = vmatprep.subr.mxu0 %v1353
    %1864 = vmatpush1.msra.mxu0 %v1350
    %1865 = vmatprep.subr.mxu0 0.0
    %1866 = vmatpush1.msra.mxu0 0.0
    %1867 = vmatprep.subr.mxu0 0.0
    %1868 = vmatpush1.msra.mxu0 0.0
    %1869 = vmatprep.subr.mxu0 0.0
    %1870 = vmatpush1.msra.mxu0 0.0
    %1871 = vmatprep.subr.mxu0 0.0
    %1872 = vmatpush1.msra.mxu0 0.0
    %1873 = vmatprep.subr.mxu0 0.0
    %1874 = vmatpush1.msra.mxu0 0.0
    %1875 = vmatprep.subr.mxu0 0.0
    %1876 = vmatpush1.msra.mxu0 0.0
    %1877 = vmatprep.subr.mxu0 0.0
    %1878 = vmatpush1.msra.mxu0 0.0
    %1879 = vmatprep.subr.mxu0 0.0
    %1880 = vmatpush1.msra.mxu0 0.0
    %1881 = vmatprep.subr.mxu0 0.0
    %1882 = vmatpush1.msra.mxu0 0.0
    %1883 = vmatprep.subr.mxu0 0.0
    %1884 = vmatpush1.msra.mxu0 0.0
    %1885 = vmatprep.subr.mxu0 0.0
    %1886 = vmatpush1.msra.mxu0 0.0
    %1887 = vmatprep.subr.mxu0 0.0
    %1888 = vmatpush1.msra.mxu0 0.0
    %1889 = vmatprep.subr.mxu0 0.0
    %1890 = vmatpush1.msra.mxu0 0.0
    %1891 = vmatprep.subr.mxu0 0.0
    %1892 = vmatpush1.msra.mxu0 0.0
    %1893 = vmatprep.subr.mxu0 0.0
    %1894 = vmatpush1.msra.mxu0 0.0
    %1895 = vmatprep.subr.mxu0 0.0
    %1896 = vmatpush1.msra.mxu0 0.0
    %1897 = vmatprep.subr.mxu0 0.0
    %1898 = vmatpush1.msra.mxu0 0.0
    %1899 = vmatprep.subr.mxu0 0.0
    %1900 = vmatpush1.msra.mxu0 0.0
    %1901 = vmatprep.subr.mxu0 0.0
    %1902 = vmatpush1.msra.mxu0 0.0
    %1903 = vmatprep.subr.mxu0 0.0
    %1904 = vmatpush1.msra.mxu0 0.0
    %1905 = vmatprep.subr.mxu0 0.0
    %1906 = vmatpush1.msra.mxu0 0.0
    %1907 = vmatprep.subr.mxu0 0.0
    %1908 = vmatpush1.msra.mxu0 0.0
    %1909 = vmatprep.subr.mxu0 0.0
    %1910 = vmatpush1.msra.mxu0 0.0
    %1911 = vmatprep.subr.mxu0 0.0
    %1912 = vmatpush1.msra.mxu0 0.0
    %1913 = vmatprep.subr.mxu0 0.0
    %1914 = vmatpush1.msra.mxu0 0.0
    %1915 = vmatprep.subr.mxu0 0.0
    %1916 = vmatpush1.msra.mxu0 0.0
    %1917 = vmatprep.subr.mxu0 0.0
    %1918 = vmatpush1.msra.mxu0 0.0
    %1919 = vmatprep.subr.mxu0 0.0
    %1920 = vmatpush1.msra.mxu0 0.0
    %1921 = vmatprep.subr.mxu0 0.0
    %1922 = vmatpush1.msra.mxu0 0.0
    %1923 = vmatprep.mubr.f32.mxu0 0.0
    %1924 = vmatmul.mubr.f32.gmra.mrb[0].mxu0 %v1305
    %v1925 = vpop.f32.mrb[0].mxu0
    %v1926 = vadd.f32 %v1292, %v1925
    %v1927 = vpop.f32.mrb[0].mxu0
    %v1928 = vadd.f32 %v1292, %v1927
    %1929 = vmatprep.mubr.f32.mxu0 0.0
    %1930 = vmatmul.mubr.f32.gmra.mrb[0].mxu0 %v1308
    %v1931 = vpop.f32.mrb[0].mxu0
    %v1932 = vadd.f32 %v1297, %v1931
    %v1933 = vpop.f32.mrb[0].mxu0
    %v1934 = vadd.f32 %v1297, %v1933
    %1935 = vmatprep.mubr.f32.mxu0 0.0
    %1936 = vmatmul.mubr.f32.gmra.mrb[0].mxu0 %v1311
    %v1937 = vpop.f32.mrb[0].mxu0
    %v1938 = vadd.f32 %v1302, %v1937
    %v1939 = vpop.f32.mrb[0].mxu0
    %v1940 = vadd.f32 %v1302, %v1939
    %1941 = vdwg.mxu0
    %1942 = vmatprep.subr.mxu0 %v1250
    %1943 = vmatpush1.msra.mxu0 %v1249
    %1944 = vmatprep.subr.mxu0 %v1266
    %1945 = vmatpush1.msra.mxu0 %v1265
    %1946 = vmatprep.subr.mxu0 %v1359
    %1947 = vmatpush1.msra.mxu0 %v1356
    %1948 = vmatprep.subr.mxu0 0.0
    %1949 = vmatpush1.msra.mxu0 0.0
    %1950 = vmatprep.subr.mxu0 0.0
    %1951 = vmatpush1.msra.mxu0 0.0
    %1952 = vmatprep.subr.mxu0 0.0
    %1953 = vmatpush1.msra.mxu0 0.0
    %1954 = vmatprep.subr.mxu0 0.0
    %1955 = vmatpush1.msra.mxu0 0.0
    %1956 = vmatprep.subr.mxu0 0.0
    %1957 = vmatpush1.msra.mxu0 0.0
    %1958 = vmatprep.subr.mxu0 0.0
    %1959 = vmatpush1.msra.mxu0 0.0
    %1960 = vmatprep.subr.mxu0 0.0
    %1961 = vmatpush1.msra.mxu0 0.0
    %1962 = vmatprep.subr.mxu0 0.0
    %1963 = vmatpush1.msra.mxu0 0.0
    %1964 = vmatprep.subr.mxu0 0.0
    %1965 = vmatpush1.msra.mxu0 0.0
    %1966 = vmatprep.subr.mxu0 0.0
    %1967 = vmatpush1.msra.mxu0 0.0
    %1968 = vmatprep.subr.mxu0 0.0
    %1969 = vmatpush1.msra.mxu0 0.0
    %1970 = vmatprep.subr.mxu0 0.0
    %1971 = vmatpush1.msra.mxu0 0.0
    %1972 = vmatprep.subr.mxu0 0.0
    %1973 = vmatpush1.msra.mxu0 0.0
    %1974 = vmatprep.subr.mxu0 0.0
    %1975 = vmatpush1.msra.mxu0 0.0
    %1976 = vmatprep.subr.mxu0 0.0
    %1977 = vmatpush1.msra.mxu0 0.0
    %1978 = vmatprep.subr.mxu0 0.0
    %1979 = vmatpush1.msra.mxu0 0.0
    %1980 = vmatprep.subr.mxu0 0.0
    %1981 = vmatpush1.msra.mxu0 0.0
    %1982 = vmatprep.subr.mxu0 0.0
    %1983 = vmatpush1.msra.mxu0 0.0
    %1984 = vmatprep.subr.mxu0 0.0
    %1985 = vmatpush1.msra.mxu0 0.0
    %1986 = vmatprep.subr.mxu0 0.0
    %1987 = vmatpush1.msra.mxu0 0.0
    %1988 = vmatprep.subr.mxu0 0.0
    %1989 = vmatpush1.msra.mxu0 0.0
    %1990 = vmatprep.subr.mxu0 0.0
    %1991 = vmatpush1.msra.mxu0 0.0
    %1992 = vmatprep.subr.mxu0 0.0
    %1993 = vmatpush1.msra.mxu0 0.0
    %1994 = vmatprep.subr.mxu0 0.0
    %1995 = vmatpush1.msra.mxu0 0.0
    %1996 = vmatprep.subr.mxu0 0.0
    %1997 = vmatpush1.msra.mxu0 0.0
    %1998 = vmatprep.subr.mxu0 0.0
    %1999 = vmatpush1.msra.mxu0 0.0
    %2000 = vmatprep.subr.mxu0 0.0
    %2001 = vmatpush1.msra.mxu0 0.0
    %2002 = vmatprep.subr.mxu0 0.0
    %2003 = vmatpush1.msra.mxu0 0.0
    %2004 = vmatprep.subr.mxu0 0.0
    %2005 = vmatpush1.msra.mxu0 0.0
    %2006 = vmatprep.mubr.f32.mxu0 0.0
    %2007 = vmatmul.mubr.f32.gmra.mrb[0].mxu0 %v1305
    %v2008 = vpop.f32.mrb[0].mxu0
    %v2009 = vadd.f32 %v1292, %v2008
    %v2010 = vpop.f32.mrb[0].mxu0
    %v2011 = vadd.f32 %v1292, %v2010
    %2012 = vmatprep.mubr.f32.mxu0 0.0
    %2013 = vmatmul.mubr.f32.gmra.mrb[0].mxu0 %v1308
    %v2014 = vpop.f32.mrb[0].mxu0
    %v2015 = vadd.f32 %v1297, %v2014
    %v2016 = vpop.f32.mrb[0].mxu0
    %v2017 = vadd.f32 %v1297, %v2016
    %2018 = vmatprep.mubr.f32.mxu0 0.0
    %2019 = vmatmul.mubr.f32.gmra.mrb[0].mxu0 %v1311
    %v2020 = vpop.f32.mrb[0].mxu0
    %v2021 = vadd.f32 %v1302, %v2020
    %v2022 = vpop.f32.mrb[0].mxu0
    %v2023 = vadd.f32 %v1302, %v2022
    %2024 = vdwg.mxu0
    %v2025 = vtanh.pop %v1428
    %v2026 = vtanh.pop %v1430
    %v2027 = vtanh.pop %v1511
    %v2028 = vtanh.pop %v1513
    %v2029 = vtanh.pop %v1594
    %v2030 = vtanh.pop %v1596
    %v2031 = vtanh.pop %v1677
    %v2032 = vtanh.pop %v1679
    %v2033 = vtanh.pop %v1760
    %v2034 = vtanh.pop %v1762
    %v2035 = vtanh.pop %v1843
    %v2036 = vtanh.pop %v1845
    %v2037 = vtanh.pop %v1926
    %v2038 = vtanh.pop %v1928
    %v2039 = vtanh.pop %v2009
    %v2040 = vtanh.pop %v2011
    %v2041 = vtanh.pop %v1434
    %v2042 = vtanh.pop %v1436
    %v2043 = vtanh.pop %v1517
    %v2044 = vtanh.pop %v1519
    %v2045 = vtanh.pop %v1600
    %v2046 = vtanh.pop %v1602
    %v2047 = vtanh.pop %v1683
    %v2048 = vtanh.pop %v1685
    %v2049 = vtanh.pop %v1766
    %v2050 = vtanh.pop %v1768
    %v2051 = vtanh.pop %v1849
    %v2052 = vtanh.pop %v1851
    %v2053 = vtanh.pop %v1932
    %v2054 = vtanh.pop %v1934
    %v2055 = vtanh.pop %v2015
    %v2056 = vtanh.pop %v2017
    %v2057 = vtanh.pop %v1440
    %v2058 = vtanh.pop %v1442
    %v2059 = vtanh.pop %v1523
    %v2060 = vtanh.pop %v1525
    %v2061 = vtanh.pop %v1606
    %v2062 = vtanh.pop %v1608
    %v2063 = vtanh.pop %v1689
    %v2064 = vtanh.pop %v1691
    %v2065 = vtanh.pop %v1772
    %v2066 = vtanh.pop %v1774
    %v2067 = vtanh.pop %v1855
    %v2068 = vtanh.pop %v1857
    %v2069 = vtanh.pop %v1938
    %v2070 = vtanh.pop %v1940
    %v2071 = vtanh.pop %v2021
    %v2072 = vtanh.pop %v2023
    %v2073 = vld [vmem:[%s7] sm:$0x1]
    %v2074 = vld [vmem:[#allocation2] sm:$0x1]
    %2076 = vset.pattern.permute.xlu0 0
    %2077 = vperm.xlu0 %2076, %v2074
    %v2078 = vpop.permute.xlu0 %2077
    %v2080 = vlaneseq
    %v2081 = vshrl.u32 %v2080, 7
    %v2082 = vsub.s32 0, %v2081
    %v2083 = vrot.slane %v2078, %v2082
    %v2085 = vsel %vm512, %v2073, 0
    %v2088 = vsel %vm522, %v2057, 0
    %v2091 = vsel %vm522, %v2058, 0
    %v2094 = vsel %vm522, %v2059, 0
    %v2097 = vsel %vm522, %v2060, 0
    %v2100 = vsel %vm522, %v2061, 0
    %v2103 = vsel %vm522, %v2062, 0
    %v2106 = vsel %vm522, %v2063, 0
    %v2109 = vsel %vm522, %v2064, 0
    %v2112 = vsel %vm522, %v2065, 0
    %v2115 = vsel %vm522, %v2066, 0
    %v2118 = vsel %vm522, %v2067, 0
    %v2121 = vsel %vm522, %v2068, 0
    %v2124 = vsel %vm522, %v2069, 0
    %v2127 = vsel %vm522, %v2070, 0
    %v2130 = vsel %vm522, %v2071, 0
    %v2133 = vsel %vm522, %v2072, 0
    %2135 = vmatprep.subr.mxu0 %v2026
    %2136 = vmatpush1.msra.mxu0 %v2025
    %2137 = vmatprep.subr.mxu0 %v2042
    %2138 = vmatpush1.msra.mxu0 %v2041
    %2139 = vmatprep.subr.mxu0 %v2091
    %2140 = vmatpush1.msra.mxu0 %v2088
    %2141 = vmatprep.subr.mxu0 0.0
    %2142 = vmatpush1.msra.mxu0 0.0
    %2143 = vmatprep.subr.mxu0 0.0
    %2144 = vmatpush1.msra.mxu0 0.0
    %2145 = vmatprep.subr.mxu0 0.0
    %2146 = vmatpush1.msra.mxu0 0.0
    %2147 = vmatprep.subr.mxu0 0.0
    %2148 = vmatpush1.msra.mxu0 0.0
    %2149 = vmatprep.subr.mxu0 0.0
    %2150 = vmatpush1.msra.mxu0 0.0
    %2151 = vmatprep.subr.mxu0 0.0
    %2152 = vmatpush1.msra.mxu0 0.0
    %2153 = vmatprep.subr.mxu0 0.0
    %2154 = vmatpush1.msra.mxu0 0.0
    %2155 = vmatprep.subr.mxu0 0.0
    %2156 = vmatpush1.msra.mxu0 0.0
    %2157 = vmatprep.subr.mxu0 0.0
    %2158 = vmatpush1.msra.mxu0 0.0
    %2159 = vmatprep.subr.mxu0 0.0
    %2160 = vmatpush1.msra.mxu0 0.0
    %2161 = vmatprep.subr.mxu0 0.0
    %2162 = vmatpush1.msra.mxu0 0.0
    %2163 = vmatprep.subr.mxu0 0.0
    %2164 = vmatpush1.msra.mxu0 0.0
    %2165 = vmatprep.subr.mxu0 0.0
    %2166 = vmatpush1.msra.mxu0 0.0
    %2167 = vmatprep.subr.mxu0 0.0
    %2168 = vmatpush1.msra.mxu0 0.0
    %2169 = vmatprep.subr.mxu0 0.0
    %2170 = vmatpush1.msra.mxu0 0.0
    %2171 = vmatprep.subr.mxu0 0.0
    %2172 = vmatpush1.msra.mxu0 0.0
    %2173 = vmatprep.subr.mxu0 0.0
    %2174 = vmatpush1.msra.mxu0 0.0
    %2175 = vmatprep.subr.mxu0 0.0
    %2176 = vmatpush1.msra.mxu0 0.0
    %2177 = vmatprep.subr.mxu0 0.0
    %2178 = vmatpush1.msra.mxu0 0.0
    %2179 = vmatprep.subr.mxu0 0.0
    %2180 = vmatpush1.msra.mxu0 0.0
    %2181 = vmatprep.subr.mxu0 0.0
    %2182 = vmatpush1.msra.mxu0 0.0
    %2183 = vmatprep.subr.mxu0 0.0
    %2184 = vmatpush1.msra.mxu0 0.0
    %2185 = vmatprep.subr.mxu0 0.0
    %2186 = vmatpush1.msra.mxu0 0.0
    %2187 = vmatprep.subr.mxu0 0.0
    %2188 = vmatpush1.msra.mxu0 0.0
    %2189 = vmatprep.subr.mxu0 0.0
    %2190 = vmatpush1.msra.mxu0 0.0
    %2191 = vmatprep.subr.mxu0 0.0
    %2192 = vmatpush1.msra.mxu0 0.0
    %2193 = vmatprep.subr.mxu0 0.0
    %2194 = vmatpush1.msra.mxu0 0.0
    %2195 = vmatprep.subr.mxu0 0.0
    %2196 = vmatpush1.msra.mxu0 0.0
    %2197 = vmatprep.subr.mxu0 0.0
    %2198 = vmatpush1.msra.mxu0 0.0
    %2199 = vmatprep.mubr.f32.mxu0 0.0
    %2200 = vmatmul.mubr.f32.gmra.mrb[0].mxu0 %v2085
    %v2201 = vpop.f32.mrb[0].mxu0
    %v2202 = vadd.f32 %v2083, %v2201
    %v2203 = vpop.f32.mrb[0].mxu0
    %v2204 = vadd.f32 %v2083, %v2203
    %2205 = vdwg.mxu0
    %2206 = vmatprep.subr.mxu0 %v2028
    %2207 = vmatpush1.msra.mxu0 %v2027
    %2208 = vmatprep.subr.mxu0 %v2044
    %2209 = vmatpush1.msra.mxu0 %v2043
    %2210 = vmatprep.subr.mxu0 %v2097
    %2211 = vmatpush1.msra.mxu0 %v2094
    %2212 = vmatprep.subr.mxu0 0.0
    %2213 = vmatpush1.msra.mxu0 0.0
    %2214 = vmatprep.subr.mxu0 0.0
    %2215 = vmatpush1.msra.mxu0 0.0
    %2216 = vmatprep.subr.mxu0 0.0
    %2217 = vmatpush1.msra.mxu0 0.0
    %2218 = vmatprep.subr.mxu0 0.0
    %2219 = vmatpush1.msra.mxu0 0.0
    %2220 = vmatprep.subr.mxu0 0.0
    %2221 = vmatpush1.msra.mxu0 0.0
    %2222 = vmatprep.subr.mxu0 0.0
    %2223 = vmatpush1.msra.mxu0 0.0
    %2224 = vmatprep.subr.mxu0 0.0
    %2225 = vmatpush1.msra.mxu0 0.0
    %2226 = vmatprep.subr.mxu0 0.0
    %2227 = vmatpush1.msra.mxu0 0.0
    %2228 = vmatprep.subr.mxu0 0.0
    %2229 = vmatpush1.msra.mxu0 0.0
    %2230 = vmatprep.subr.mxu0 0.0
    %2231 = vmatpush1.msra.mxu0 0.0
    %2232 = vmatprep.subr.mxu0 0.0
    %2233 = vmatpush1.msra.mxu0 0.0
    %2234 = vmatprep.subr.mxu0 0.0
    %2235 = vmatpush1.msra.mxu0 0.0
    %2236 = vmatprep.subr.mxu0 0.0
    %2237 = vmatpush1.msra.mxu0 0.0
    %2238 = vmatprep.subr.mxu0 0.0
    %2239 = vmatpush1.msra.mxu0 0.0
    %2240 = vmatprep.subr.mxu0 0.0
    %2241 = vmatpush1.msra.mxu0 0.0
    %2242 = vmatprep.subr.mxu0 0.0
    %2243 = vmatpush1.msra.mxu0 0.0
    %2244 = vmatprep.subr.mxu0 0.0
    %2245 = vmatpush1.msra.mxu0 0.0
    %2246 = vmatprep.subr.mxu0 0.0
    %2247 = vmatpush1.msra.mxu0 0.0
    %2248 = vmatprep.subr.mxu0 0.0
    %2249 = vmatpush1.msra.mxu0 0.0
    %2250 = vmatprep.subr.mxu0 0.0
    %2251 = vmatpush1.msra.mxu0 0.0
    %2252 = vmatprep.subr.mxu0 0.0
    %2253 = vmatpush1.msra.mxu0 0.0
    %2254 = vmatprep.subr.mxu0 0.0
    %2255 = vmatpush1.msra.mxu0 0.0
    %2256 = vmatprep.subr.mxu0 0.0
    %2257 = vmatpush1.msra.mxu0 0.0
    %2258 = vmatprep.subr.mxu0 0.0
    %2259 = vmatpush1.msra.mxu0 0.0
    %2260 = vmatprep.subr.mxu0 0.0
    %2261 = vmatpush1.msra.mxu0 0.0
    %2262 = vmatprep.subr.mxu0 0.0
    %2263 = vmatpush1.msra.mxu0 0.0
    %2264 = vmatprep.subr.mxu0 0.0
    %2265 = vmatpush1.msra.mxu0 0.0
    %2266 = vmatprep.subr.mxu0 0.0
    %2267 = vmatpush1.msra.mxu0 0.0
    %2268 = vmatprep.subr.mxu0 0.0
    %2269 = vmatpush1.msra.mxu0 0.0
    %2270 = vmatprep.mubr.f32.mxu0 0.0
    %2271 = vmatmul.mubr.f32.gmra.mrb[0].mxu0 %v2085
    %v2272 = vpop.f32.mrb[0].mxu0
    %v2273 = vadd.f32 %v2083, %v2272
    %v2274 = vpop.f32.mrb[0].mxu0
    %v2275 = vadd.f32 %v2083, %v2274
    %2276 = vdwg.mxu0
    %2277 = vmatprep.subr.mxu0 %v2030
    %2278 = vmatpush1.msra.mxu0 %v2029
    %2279 = vmatprep.subr.mxu0 %v2046
    %2280 = vmatpush1.msra.mxu0 %v2045
    %2281 = vmatprep.subr.mxu0 %v2103
    %2282 = vmatpush1.msra.mxu0 %v2100
    %2283 = vmatprep.subr.mxu0 0.0
    %2284 = vmatpush1.msra.mxu0 0.0
    %2285 = vmatprep.subr.mxu0 0.0
    %2286 = vmatpush1.msra.mxu0 0.0
    %2287 = vmatprep.subr.mxu0 0.0
    %2288 = vmatpush1.msra.mxu0 0.0
    %2289 = vmatprep.subr.mxu0 0.0
    %2290 = vmatpush1.msra.mxu0 0.0
    %2291 = vmatprep.subr.mxu0 0.0
    %2292 = vmatpush1.msra.mxu0 0.0
    %2293 = vmatprep.subr.mxu0 0.0
    %2294 = vmatpush1.msra.mxu0 0.0
    %2295 = vmatprep.subr.mxu0 0.0
    %2296 = vmatpush1.msra.mxu0 0.0
    %2297 = vmatprep.subr.mxu0 0.0
    %2298 = vmatpush1.msra.mxu0 0.0
    %2299 = vmatprep.subr.mxu0 0.0
    %2300 = vmatpush1.msra.mxu0 0.0
    %2301 = vmatprep.subr.mxu0 0.0
    %2302 = vmatpush1.msra.mxu0 0.0
    %2303 = vmatprep.subr.mxu0 0.0
    %2304 = vmatpush1.msra.mxu0 0.0
    %2305 = vmatprep.subr.mxu0 0.0
    %2306 = vmatpush1.msra.mxu0 0.0
    %2307 = vmatprep.subr.mxu0 0.0
    %2308 = vmatpush1.msra.mxu0 0.0
    %2309 = vmatprep.subr.mxu0 0.0
    %2310 = vmatpush1.msra.mxu0 0.0
    %2311 = vmatprep.subr.mxu0 0.0
    %2312 = vmatpush1.msra.mxu0 0.0
    %2313 = vmatprep.subr.mxu0 0.0
    %2314 = vmatpush1.msra.mxu0 0.0
    %2315 = vmatprep.subr.mxu0 0.0
    %2316 = vmatpush1.msra.mxu0 0.0
    %2317 = vmatprep.subr.mxu0 0.0
    %2318 = vmatpush1.msra.mxu0 0.0
    %2319 = vmatprep.subr.mxu0 0.0
    %2320 = vmatpush1.msra.mxu0 0.0
    %2321 = vmatprep.subr.mxu0 0.0
    %2322 = vmatpush1.msra.mxu0 0.0
    %2323 = vmatprep.subr.mxu0 0.0
    %2324 = vmatpush1.msra.mxu0 0.0
    %2325 = vmatprep.subr.mxu0 0.0
    %2326 = vmatpush1.msra.mxu0 0.0
    %2327 = vmatprep.subr.mxu0 0.0
    %2328 = vmatpush1.msra.mxu0 0.0
    %2329 = vmatprep.subr.mxu0 0.0
    %2330 = vmatpush1.msra.mxu0 0.0
    %2331 = vmatprep.subr.mxu0 0.0
    %2332 = vmatpush1.msra.mxu0 0.0
    %2333 = vmatprep.subr.mxu0 0.0
    %2334 = vmatpush1.msra.mxu0 0.0
    %2335 = vmatprep.subr.mxu0 0.0
    %2336 = vmatpush1.msra.mxu0 0.0
    %2337 = vmatprep.subr.mxu0 0.0
    %2338 = vmatpush1.msra.mxu0 0.0
    %2339 = vmatprep.subr.mxu0 0.0
    %2340 = vmatpush1.msra.mxu0 0.0
    %2341 = vmatprep.mubr.f32.mxu0 0.0
    %2342 = vmatmul.mubr.f32.gmra.mrb[0].mxu0 %v2085
    %v2343 = vpop.f32.mrb[0].mxu0
    %v2344 = vadd.f32 %v2083, %v2343
    %v2345 = vpop.f32.mrb[0].mxu0
    %v2346 = vadd.f32 %v2083, %v2345
    %2347 = vdwg.mxu0
    %2348 = vmatprep.subr.mxu0 %v2032
    %2349 = vmatpush1.msra.mxu0 %v2031
    %2350 = vmatprep.subr.mxu0 %v2048
    %2351 = vmatpush1.msra.mxu0 %v2047
    %2352 = vmatprep.subr.mxu0 %v2109
    %2353 = vmatpush1.msra.mxu0 %v2106
    %2354 = vmatprep.subr.mxu0 0.0
    %2355 = vmatpush1.msra.mxu0 0.0
    %2356 = vmatprep.subr.mxu0 0.0
    %2357 = vmatpush1.msra.mxu0 0.0
    %2358 = vmatprep.subr.mxu0 0.0
    %2359 = vmatpush1.msra.mxu0 0.0
    %2360 = vmatprep.subr.mxu0 0.0
    %2361 = vmatpush1.msra.mxu0 0.0
    %2362 = vmatprep.subr.mxu0 0.0
    %2363 = vmatpush1.msra.mxu0 0.0
    %2364 = vmatprep.subr.mxu0 0.0
    %2365 = vmatpush1.msra.mxu0 0.0
    %2366 = vmatprep.subr.mxu0 0.0
    %2367 = vmatpush1.msra.mxu0 0.0
    %2368 = vmatprep.subr.mxu0 0.0
    %2369 = vmatpush1.msra.mxu0 0.0
    %2370 = vmatprep.subr.mxu0 0.0
    %2371 = vmatpush1.msra.mxu0 0.0
    %2372 = vmatprep.subr.mxu0 0.0
    %2373 = vmatpush1.msra.mxu0 0.0
    %2374 = vmatprep.subr.mxu0 0.0
    %2375 = vmatpush1.msra.mxu0 0.0
    %2376 = vmatprep.subr.mxu0 0.0
    %2377 = vmatpush1.msra.mxu0 0.0
    %2378 = vmatprep.subr.mxu0 0.0
    %2379 = vmatpush1.msra.mxu0 0.0
    %2380 = vmatprep.subr.mxu0 0.0
    %2381 = vmatpush1.msra.mxu0 0.0
    %2382 = vmatprep.subr.mxu0 0.0
    %2383 = vmatpush1.msra.mxu0 0.0
    %2384 = vmatprep.subr.mxu0 0.0
    %2385 = vmatpush1.msra.mxu0 0.0
    %2386 = vmatprep.subr.mxu0 0.0
    %2387 = vmatpush1.msra.mxu0 0.0
    %2388 = vmatprep.subr.mxu0 0.0
    %2389 = vmatpush1.msra.mxu0 0.0
    %2390 = vmatprep.subr.mxu0 0.0
    %2391 = vmatpush1.msra.mxu0 0.0
    %2392 = vmatprep.subr.mxu0 0.0
    %2393 = vmatpush1.msra.mxu0 0.0
    %2394 = vmatprep.subr.mxu0 0.0
    %2395 = vmatpush1.msra.mxu0 0.0
    %2396 = vmatprep.subr.mxu0 0.0
    %2397 = vmatpush1.msra.mxu0 0.0
    %2398 = vmatprep.subr.mxu0 0.0
    %2399 = vmatpush1.msra.mxu0 0.0
    %2400 = vmatprep.subr.mxu0 0.0
    %2401 = vmatpush1.msra.mxu0 0.0
    %2402 = vmatprep.subr.mxu0 0.0
    %2403 = vmatpush1.msra.mxu0 0.0
    %2404 = vmatprep.subr.mxu0 0.0
    %2405 = vmatpush1.msra.mxu0 0.0
    %2406 = vmatprep.subr.mxu0 0.0
    %2407 = vmatpush1.msra.mxu0 0.0
    %2408 = vmatprep.subr.mxu0 0.0
    %2409 = vmatpush1.msra.mxu0 0.0
    %2410 = vmatprep.subr.mxu0 0.0
    %2411 = vmatpush1.msra.mxu0 0.0
    %2412 = vmatprep.mubr.f32.mxu0 0.0
    %2413 = vmatmul.mubr.f32.gmra.mrb[0].mxu0 %v2085
    %v2414 = vpop.f32.mrb[0].mxu0
    %v2415 = vadd.f32 %v2083, %v2414
    %v2416 = vpop.f32.mrb[0].mxu0
    %v2417 = vadd.f32 %v2083, %v2416
    %2418 = vdwg.mxu0
    %2419 = vmatprep.subr.mxu0 %v2034
    %2420 = vmatpush1.msra.mxu0 %v2033
    %2421 = vmatprep.subr.mxu0 %v2050
    %2422 = vmatpush1.msra.mxu0 %v2049
    %2423 = vmatprep.subr.mxu0 %v2115
    %2424 = vmatpush1.msra.mxu0 %v2112
    %2425 = vmatprep.subr.mxu0 0.0
    %2426 = vmatpush1.msra.mxu0 0.0
    %2427 = vmatprep.subr.mxu0 0.0
    %2428 = vmatpush1.msra.mxu0 0.0
    %2429 = vmatprep.subr.mxu0 0.0
    %2430 = vmatpush1.msra.mxu0 0.0
    %2431 = vmatprep.subr.mxu0 0.0
    %2432 = vmatpush1.msra.mxu0 0.0
    %2433 = vmatprep.subr.mxu0 0.0
    %2434 = vmatpush1.msra.mxu0 0.0
    %2435 = vmatprep.subr.mxu0 0.0
    %2436 = vmatpush1.msra.mxu0 0.0
    %2437 = vmatprep.subr.mxu0 0.0
    %2438 = vmatpush1.msra.mxu0 0.0
    %2439 = vmatprep.subr.mxu0 0.0
    %2440 = vmatpush1.msra.mxu0 0.0
    %2441 = vmatprep.subr.mxu0 0.0
    %2442 = vmatpush1.msra.mxu0 0.0
    %2443 = vmatprep.subr.mxu0 0.0
    %2444 = vmatpush1.msra.mxu0 0.0
    %2445 = vmatprep.subr.mxu0 0.0
    %2446 = vmatpush1.msra.mxu0 0.0
    %2447 = vmatprep.subr.mxu0 0.0
    %2448 = vmatpush1.msra.mxu0 0.0
    %2449 = vmatprep.subr.mxu0 0.0
    %2450 = vmatpush1.msra.mxu0 0.0
    %2451 = vmatprep.subr.mxu0 0.0
    %2452 = vmatpush1.msra.mxu0 0.0
    %2453 = vmatprep.subr.mxu0 0.0
    %2454 = vmatpush1.msra.mxu0 0.0
    %2455 = vmatprep.subr.mxu0 0.0
    %2456 = vmatpush1.msra.mxu0 0.0
    %2457 = vmatprep.subr.mxu0 0.0
    %2458 = vmatpush1.msra.mxu0 0.0
    %2459 = vmatprep.subr.mxu0 0.0
    %2460 = vmatpush1.msra.mxu0 0.0
    %2461 = vmatprep.subr.mxu0 0.0
    %2462 = vmatpush1.msra.mxu0 0.0
    %2463 = vmatprep.subr.mxu0 0.0
    %2464 = vmatpush1.msra.mxu0 0.0
    %2465 = vmatprep.subr.mxu0 0.0
    %2466 = vmatpush1.msra.mxu0 0.0
    %2467 = vmatprep.subr.mxu0 0.0
    %2468 = vmatpush1.msra.mxu0 0.0
    %2469 = vmatprep.subr.mxu0 0.0
    %2470 = vmatpush1.msra.mxu0 0.0
    %2471 = vmatprep.subr.mxu0 0.0
    %2472 = vmatpush1.msra.mxu0 0.0
    %2473 = vmatprep.subr.mxu0 0.0
    %2474 = vmatpush1.msra.mxu0 0.0
    %2475 = vmatprep.subr.mxu0 0.0
    %2476 = vmatpush1.msra.mxu0 0.0
    %2477 = vmatprep.subr.mxu0 0.0
    %2478 = vmatpush1.msra.mxu0 0.0
    %2479 = vmatprep.subr.mxu0 0.0
    %2480 = vmatpush1.msra.mxu0 0.0
    %2481 = vmatprep.subr.mxu0 0.0
    %2482 = vmatpush1.msra.mxu0 0.0
    %2483 = vmatprep.mubr.f32.mxu0 0.0
    %2484 = vmatmul.mubr.f32.gmra.mrb[0].mxu0 %v2085
    %v2485 = vpop.f32.mrb[0].mxu0
    %v2486 = vadd.f32 %v2083, %v2485
    %v2487 = vpop.f32.mrb[0].mxu0
    %v2488 = vadd.f32 %v2083, %v2487
    %2489 = vdwg.mxu0
    %2490 = vmatprep.subr.mxu0 %v2036
    %2491 = vmatpush1.msra.mxu0 %v2035
    %2492 = vmatprep.subr.mxu0 %v2052
    %2493 = vmatpush1.msra.mxu0 %v2051
    %2494 = vmatprep.subr.mxu0 %v2121
    %2495 = vmatpush1.msra.mxu0 %v2118
    %2496 = vmatprep.subr.mxu0 0.0
    %2497 = vmatpush1.msra.mxu0 0.0
    %2498 = vmatprep.subr.mxu0 0.0
    %2499 = vmatpush1.msra.mxu0 0.0
    %2500 = vmatprep.subr.mxu0 0.0
    %2501 = vmatpush1.msra.mxu0 0.0
    %2502 = vmatprep.subr.mxu0 0.0
    %2503 = vmatpush1.msra.mxu0 0.0
    %2504 = vmatprep.subr.mxu0 0.0
    %2505 = vmatpush1.msra.mxu0 0.0
    %2506 = vmatprep.subr.mxu0 0.0
    %2507 = vmatpush1.msra.mxu0 0.0
    %2508 = vmatprep.subr.mxu0 0.0
    %2509 = vmatpush1.msra.mxu0 0.0
    %2510 = vmatprep.subr.mxu0 0.0
    %2511 = vmatpush1.msra.mxu0 0.0
    %2512 = vmatprep.subr.mxu0 0.0
    %2513 = vmatpush1.msra.mxu0 0.0
    %2514 = vmatprep.subr.mxu0 0.0
    %2515 = vmatpush1.msra.mxu0 0.0
    %2516 = vmatprep.subr.mxu0 0.0
    %2517 = vmatpush1.msra.mxu0 0.0
    %2518 = vmatprep.subr.mxu0 0.0
    %2519 = vmatpush1.msra.mxu0 0.0
    %2520 = vmatprep.subr.mxu0 0.0
    %2521 = vmatpush1.msra.mxu0 0.0
    %2522 = vmatprep.subr.mxu0 0.0
    %2523 = vmatpush1.msra.mxu0 0.0
    %2524 = vmatprep.subr.mxu0 0.0
    %2525 = vmatpush1.msra.mxu0 0.0
    %2526 = vmatprep.subr.mxu0 0.0
    %2527 = vmatpush1.msra.mxu0 0.0
    %2528 = vmatprep.subr.mxu0 0.0
    %2529 = vmatpush1.msra.mxu0 0.0
    %2530 = vmatprep.subr.mxu0 0.0
    %2531 = vmatpush1.msra.mxu0 0.0
    %2532 = vmatprep.subr.mxu0 0.0
    %2533 = vmatpush1.msra.mxu0 0.0
    %2534 = vmatprep.subr.mxu0 0.0
    %2535 = vmatpush1.msra.mxu0 0.0
    %2536 = vmatprep.subr.mxu0 0.0
    %2537 = vmatpush1.msra.mxu0 0.0
    %2538 = vmatprep.subr.mxu0 0.0
    %2539 = vmatpush1.msra.mxu0 0.0
    %2540 = vmatprep.subr.mxu0 0.0
    %2541 = vmatpush1.msra.mxu0 0.0
    %2542 = vmatprep.subr.mxu0 0.0
    %2543 = vmatpush1.msra.mxu0 0.0
    %2544 = vmatprep.subr.mxu0 0.0
    %2545 = vmatpush1.msra.mxu0 0.0
    %2546 = vmatprep.subr.mxu0 0.0
    %2547 = vmatpush1.msra.mxu0 0.0
    %2548 = vmatprep.subr.mxu0 0.0
    %2549 = vmatpush1.msra.mxu0 0.0
    %2550 = vmatprep.subr.mxu0 0.0
    %2551 = vmatpush1.msra.mxu0 0.0
    %2552 = vmatprep.subr.mxu0 0.0
    %2553 = vmatpush1.msra.mxu0 0.0
    %2554 = vmatprep.mubr.f32.mxu0 0.0
    %2555 = vmatmul.mubr.f32.gmra.mrb[0].mxu0 %v2085
    %v2556 = vpop.f32.mrb[0].mxu0
    %v2557 = vadd.f32 %v2083, %v2556
    %v2558 = vpop.f32.mrb[0].mxu0
    %v2559 = vadd.f32 %v2083, %v2558
    %2560 = vdwg.mxu0
    %2561 = vmatprep.subr.mxu0 %v2038
    %2562 = vmatpush1.msra.mxu0 %v2037
    %2563 = vmatprep.subr.mxu0 %v2054
    %2564 = vmatpush1.msra.mxu0 %v2053
    %2565 = vmatprep.subr.mxu0 %v2127
    %2566 = vmatpush1.msra.mxu0 %v2124
    %2567 = vmatprep.subr.mxu0 0.0
    %2568 = vmatpush1.msra.mxu0 0.0
    %2569 = vmatprep.subr.mxu0 0.0
    %2570 = vmatpush1.msra.mxu0 0.0
    %2571 = vmatprep.subr.mxu0 0.0
    %2572 = vmatpush1.msra.mxu0 0.0
    %2573 = vmatprep.subr.mxu0 0.0
    %2574 = vmatpush1.msra.mxu0 0.0
    %2575 = vmatprep.subr.mxu0 0.0
    %2576 = vmatpush1.msra.mxu0 0.0
    %2577 = vmatprep.subr.mxu0 0.0
    %2578 = vmatpush1.msra.mxu0 0.0
    %2579 = vmatprep.subr.mxu0 0.0
    %2580 = vmatpush1.msra.mxu0 0.0
    %2581 = vmatprep.subr.mxu0 0.0
    %2582 = vmatpush1.msra.mxu0 0.0
    %2583 = vmatprep.subr.mxu0 0.0
    %2584 = vmatpush1.msra.mxu0 0.0
    %2585 = vmatprep.subr.mxu0 0.0
    %2586 = vmatpush1.msra.mxu0 0.0
    %2587 = vmatprep.subr.mxu0 0.0
    %2588 = vmatpush1.msra.mxu0 0.0
    %2589 = vmatprep.subr.mxu0 0.0
    %2590 = vmatpush1.msra.mxu0 0.0
    %2591 = vmatprep.subr.mxu0 0.0
    %2592 = vmatpush1.msra.mxu0 0.0
    %2593 = vmatprep.subr.mxu0 0.0
    %2594 = vmatpush1.msra.mxu0 0.0
    %2595 = vmatprep.subr.mxu0 0.0
    %2596 = vmatpush1.msra.mxu0 0.0
    %2597 = vmatprep.subr.mxu0 0.0
    %2598 = vmatpush1.msra.mxu0 0.0
    %2599 = vmatprep.subr.mxu0 0.0
    %2600 = vmatpush1.msra.mxu0 0.0
    %2601 = vmatprep.subr.mxu0 0.0
    %2602 = vmatpush1.msra.mxu0 0.0
    %2603 = vmatprep.subr.mxu0 0.0
    %2604 = vmatpush1.msra.mxu0 0.0
    %2605 = vmatprep.subr.mxu0 0.0
    %2606 = vmatpush1.msra.mxu0 0.0
    %2607 = vmatprep.subr.mxu0 0.0
    %2608 = vmatpush1.msra.mxu0 0.0
    %2609 = vmatprep.subr.mxu0 0.0
    %2610 = vmatpush1.msra.mxu0 0.0
    %2611 = vmatprep.subr.mxu0 0.0
    %2612 = vmatpush1.msra.mxu0 0.0
    %2613 = vmatprep.subr.mxu0 0.0
    %2614 = vmatpush1.msra.mxu0 0.0
    %2615 = vmatprep.subr.mxu0 0.0
    %2616 = vmatpush1.msra.mxu0 0.0
    %2617 = vmatprep.subr.mxu0 0.0
    %2618 = vmatpush1.msra.mxu0 0.0
    %2619 = vmatprep.subr.mxu0 0.0
    %2620 = vmatpush1.msra.mxu0 0.0
    %2621 = vmatprep.subr.mxu0 0.0
    %2622 = vmatpush1.msra.mxu0 0.0
    %2623 = vmatprep.subr.mxu0 0.0
    %2624 = vmatpush1.msra.mxu0 0.0
    %2625 = vmatprep.mubr.f32.mxu0 0.0
    %2626 = vmatmul.mubr.f32.gmra.mrb[0].mxu0 %v2085
    %v2627 = vpop.f32.mrb[0].mxu0
    %v2628 = vadd.f32 %v2083, %v2627
    %v2629 = vpop.f32.mrb[0].mxu0
    %v2630 = vadd.f32 %v2083, %v2629
    %2631 = vdwg.mxu0
    %2632 = vmatprep.subr.mxu0 %v2040
    %2633 = vmatpush1.msra.mxu0 %v2039
    %2634 = vmatprep.subr.mxu0 %v2056
    %2635 = vmatpush1.msra.mxu0 %v2055
    %2636 = vmatprep.subr.mxu0 %v2133
    %2637 = vmatpush1.msra.mxu0 %v2130
    %2638 = vmatprep.subr.mxu0 0.0
    %2639 = vmatpush1.msra.mxu0 0.0
    %2640 = vmatprep.subr.mxu0 0.0
    %2641 = vmatpush1.msra.mxu0 0.0
    %2642 = vmatprep.subr.mxu0 0.0
    %2643 = vmatpush1.msra.mxu0 0.0
    %2644 = vmatprep.subr.mxu0 0.0
    %2645 = vmatpush1.msra.mxu0 0.0
    %2646 = vmatprep.subr.mxu0 0.0
    %2647 = vmatpush1.msra.mxu0 0.0
    %2648 = vmatprep.subr.mxu0 0.0
    %2649 = vmatpush1.msra.mxu0 0.0
    %2650 = vmatprep.subr.mxu0 0.0
    %2651 = vmatpush1.msra.mxu0 0.0
    %2652 = vmatprep.subr.mxu0 0.0
    %2653 = vmatpush1.msra.mxu0 0.0
    %2654 = vmatprep.subr.mxu0 0.0
    %2655 = vmatpush1.msra.mxu0 0.0
    %2656 = vmatprep.subr.mxu0 0.0
    %2657 = vmatpush1.msra.mxu0 0.0
    %2658 = vmatprep.subr.mxu0 0.0
    %2659 = vmatpush1.msra.mxu0 0.0
    %2660 = vmatprep.subr.mxu0 0.0
    %2661 = vmatpush1.msra.mxu0 0.0
    %2662 = vmatprep.subr.mxu0 0.0
    %2663 = vmatpush1.msra.mxu0 0.0
    %2664 = vmatprep.subr.mxu0 0.0
    %2665 = vmatpush1.msra.mxu0 0.0
    %2666 = vmatprep.subr.mxu0 0.0
    %2667 = vmatpush1.msra.mxu0 0.0
    %2668 = vmatprep.subr.mxu0 0.0
    %2669 = vmatpush1.msra.mxu0 0.0
    %2670 = vmatprep.subr.mxu0 0.0
    %2671 = vmatpush1.msra.mxu0 0.0
    %2672 = vmatprep.subr.mxu0 0.0
    %2673 = vmatpush1.msra.mxu0 0.0
    %2674 = vmatprep.subr.mxu0 0.0
    %2675 = vmatpush1.msra.mxu0 0.0
    %2676 = vmatprep.subr.mxu0 0.0
    %2677 = vmatpush1.msra.mxu0 0.0
    %2678 = vmatprep.subr.mxu0 0.0
    %2679 = vmatpush1.msra.mxu0 0.0
    %2680 = vmatprep.subr.mxu0 0.0
    %2681 = vmatpush1.msra.mxu0 0.0
    %2682 = vmatprep.subr.mxu0 0.0
    %2683 = vmatpush1.msra.mxu0 0.0
    %2684 = vmatprep.subr.mxu0 0.0
    %2685 = vmatpush1.msra.mxu0 0.0
    %2686 = vmatprep.subr.mxu0 0.0
    %2687 = vmatpush1.msra.mxu0 0.0
    %2688 = vmatprep.subr.mxu0 0.0
    %2689 = vmatpush1.msra.mxu0 0.0
    %2690 = vmatprep.subr.mxu0 0.0
    %2691 = vmatpush1.msra.mxu0 0.0
    %2692 = vmatprep.subr.mxu0 0.0
    %2693 = vmatpush1.msra.mxu0 0.0
    %2694 = vmatprep.subr.mxu0 0.0
    %2695 = vmatpush1.msra.mxu0 0.0
    %2696 = vmatprep.mubr.f32.mxu0 0.0
    %2697 = vmatmul.mubr.f32.gmra.mrb[0].mxu0 %v2085
    %v2698 = vpop.f32.mrb[0].mxu0
    %v2699 = vadd.f32 %v2083, %v2698
    %v2700 = vpop.f32.mrb[0].mxu0
    %v2701 = vadd.f32 %v2083, %v2700
    %2702 = vdwg.mxu0
    %v2703 = vmul.f32 %v2202, 0.5
    %v2704 = vmul.f32 %v2204, 0.5
    %v2705 = vmul.f32 %v2273, 0.5
    %v2706 = vmul.f32 %v2275, 0.5
    %v2707 = vmul.f32 %v2344, 0.5
    %v2708 = vmul.f32 %v2346, 0.5
    %v2709 = vmul.f32 %v2415, 0.5
    %v2710 = vmul.f32 %v2417, 0.5
    %v2711 = vmul.f32 %v2486, 0.5
    %v2712 = vmul.f32 %v2488, 0.5
    %v2713 = vmul.f32 %v2557, 0.5
    %v2714 = vmul.f32 %v2559, 0.5
    %v2715 = vmul.f32 %v2628, 0.5
    %v2716 = vmul.f32 %v2630, 0.5
    %v2717 = vmul.f32 %v2699, 0.5
    %v2718 = vmul.f32 %v2701, 0.5
    %v2719 = vtanh.pop %v2703
    %v2720 = vtanh.pop %v2704
    %v2721 = vtanh.pop %v2705
    %v2722 = vtanh.pop %v2706
    %v2723 = vtanh.pop %v2707
    %v2724 = vtanh.pop %v2708
    %v2725 = vtanh.pop %v2709
    %v2726 = vtanh.pop %v2710
    %v2727 = vtanh.pop %v2711
    %v2728 = vtanh.pop %v2712
    %v2729 = vtanh.pop %v2713
    %v2730 = vtanh.pop %v2714
    %v2731 = vtanh.pop %v2715
    %v2732 = vtanh.pop %v2716
    %v2733 = vtanh.pop %v2717
    %v2734 = vtanh.pop %v2718
    %v2735 = vmul.f32 %v2719, 0.5
    %v2736 = vmul.f32 %v2720, 0.5
    %v2737 = vmul.f32 %v2721, 0.5
    %v2738 = vmul.f32 %v2722, 0.5
    %v2739 = vmul.f32 %v2723, 0.5
    %v2740 = vmul.f32 %v2724, 0.5
    %v2741 = vmul.f32 %v2725, 0.5
    %v2742 = vmul.f32 %v2726, 0.5
    %v2743 = vmul.f32 %v2727, 0.5
    %v2744 = vmul.f32 %v2728, 0.5
    %v2745 = vmul.f32 %v2729, 0.5
    %v2746 = vmul.f32 %v2730, 0.5
    %v2747 = vmul.f32 %v2731, 0.5
    %v2748 = vmul.f32 %v2732, 0.5
    %v2749 = vmul.f32 %v2733, 0.5
    %v2750 = vmul.f32 %v2734, 0.5
    %v2751 = vadd.f32 %v2735, 0.5
    %v2752 = vadd.f32 %v2736, 0.5
    %v2753 = vadd.f32 %v2737, 0.5
    %v2754 = vadd.f32 %v2738, 0.5
    %v2755 = vadd.f32 %v2739, 0.5
    %v2756 = vadd.f32 %v2740, 0.5
    %v2757 = vadd.f32 %v2741, 0.5
    %v2758 = vadd.f32 %v2742, 0.5
    %v2759 = vadd.f32 %v2743, 0.5
    %v2760 = vadd.f32 %v2744, 0.5
    %v2761 = vadd.f32 %v2745, 0.5
    %v2762 = vadd.f32 %v2746, 0.5
    %v2763 = vadd.f32 %v2747, 0.5
    %v2764 = vadd.f32 %v2748, 0.5
    %v2765 = vadd.f32 %v2749, 0.5
    %v2766 = vadd.f32 %v2750, 0.5
    %v2783 = vcombine.low %v2751, %v2752
    %v2784 = vcombine.low %v2753, %v2754
    %v2785 = vcombine.low %v2755, %v2756
    %v2786 = vcombine.low %v2757, %v2758
    %v2788 = vunpack.c.l.s4 1966171168
    %v2789 = vunpack.c.0.s8 %v2788
    %v2790 = vlaneseq
    %v2791 = vshrl.u32 %v2790, 7
    %v2792 = vsub.s32 %v2789, %v2791
    %v2793 = vrot.slane %v2783, %v2792
    %v2795 = vunpack.c.l.s4 1966171168
    %v2796 = vunpack.c.0.s8 %v2795
    %v2797 = vlaneseq
    %v2798 = vshrl.u32 %v2797, 7
    %v2799 = vsub.s32 %v2796, %v2798
    %v2800 = vrot.slane %v2784, %v2799
    %v2802 = vunpack.c.l.s4 1966171168
    %v2803 = vunpack.c.0.s8 %v2802
    %v2804 = vlaneseq
    %v2805 = vshrl.u32 %v2804, 7
    %v2806 = vsub.s32 %v2803, %v2805
    %v2807 = vrot.slane %v2785, %v2806
    %v2809 = vunpack.c.l.s4 1966171168
    %v2810 = vunpack.c.0.s8 %v2809
    %v2811 = vlaneseq
    %v2812 = vshrl.u32 %v2811, 7
    %v2813 = vsub.s32 %v2810, %v2812
    %v2814 = vrot.slane %v2786, %v2813
    %v2815 = vcombine.low %v2793, %v2800
    %v2816 = vcombine.low %v2807, %v2814
    %v2818 = vunpack.c.l.s4 1966171168
    %v2819 = vunpack.c.0.s8 %v2818
    %v2820 = vlaneseq
    %v2821 = vshrl.u32 %v2820, 7
    %v2822 = vsub.s32 %v2819, %v2821
    %v2823 = vrot.slane %v2815, %v2822
    %v2825 = vunpack.c.l.s4 1966171168
    %v2826 = vunpack.c.0.s8 %v2825
    %v2827 = vlaneseq
    %v2828 = vshrl.u32 %v2827, 7
    %v2829 = vsub.s32 %v2826, %v2828
    %v2830 = vrot.slane %v2816, %v2829
    %v2831 = vcombine.low %v2823, %v2830
    %v2832 = vcombine.low %v2759, %v2760
    %v2833 = vcombine.low %v2761, %v2762
    %v2834 = vcombine.low %v2763, %v2764
    %v2835 = vcombine.low %v2765, %v2766
    %v2837 = vunpack.c.l.s4 1966171168
    %v2838 = vunpack.c.0.s8 %v2837
    %v2839 = vlaneseq
    %v2840 = vshrl.u32 %v2839, 7
    %v2841 = vsub.s32 %v2838, %v2840
    %v2842 = vrot.slane %v2832, %v2841
    %v2844 = vunpack.c.l.s4 1966171168
    %v2845 = vunpack.c.0.s8 %v2844
    %v2846 = vlaneseq
    %v2847 = vshrl.u32 %v2846, 7
    %v2848 = vsub.s32 %v2845, %v2847
    %v2849 = vrot.slane %v2833, %v2848
    %v2851 = vunpack.c.l.s4 1966171168
    %v2852 = vunpack.c.0.s8 %v2851
    %v2853 = vlaneseq
    %v2854 = vshrl.u32 %v2853, 7
    %v2855 = vsub.s32 %v2852, %v2854
    %v2856 = vrot.slane %v2834, %v2855
    %v2858 = vunpack.c.l.s4 1966171168
    %v2859 = vunpack.c.0.s8 %v2858
    %v2860 = vlaneseq
    %v2861 = vshrl.u32 %v2860, 7
    %v2862 = vsub.s32 %v2859, %v2861
    %v2863 = vrot.slane %v2835, %v2862
    %v2864 = vcombine.low %v2842, %v2849
    %v2865 = vcombine.low %v2856, %v2863
    %v2867 = vunpack.c.l.s4 1966171168
    %v2868 = vunpack.c.0.s8 %v2867
    %v2869 = vlaneseq
    %v2870 = vshrl.u32 %v2869, 7
    %v2871 = vsub.s32 %v2868, %v2870
    %v2872 = vrot.slane %v2864, %v2871
    %v2874 = vunpack.c.l.s4 1966171168
    %v2875 = vunpack.c.0.s8 %v2874
    %v2876 = vlaneseq
    %v2877 = vshrl.u32 %v2876, 7
    %v2878 = vsub.s32 %v2875, %v2877
    %v2879 = vrot.slane %v2865, %v2878
    %v2880 = vcombine.low %v2872, %v2879
    %2883 = vst [vmem:[#allocation3] sm:$0xff] %v2831
    %2884 = vst [vmem:[#allocation3 + $0x8] sm:$0xff] %v2880
    // Predicated region
    $region38: #{tpu_custom_call.1} parent=1 // pred_check
      _
    $region39: #{tpu_custom_call.1} parent=1 // pred_check_branch
      %2886 = sbr.rel (0) target = $region41
    $region40: #{tpu_custom_call.1} parent=1 // pred_region
      %s2888 = ssub.s32 256, 256
      %2889 = vsyncadd [#allocation4], %s2888
      %s2891 = sshll.u32 [#allocation3], 4
      %s2892 = int_to_ptr.vmem [resolvable:$true] %s2891
      %2894 = dma.vmem_to_hbm [thread:$0]  %s2892, 256, %s9, [#allocation4]
    $region41: #{tpu_custom_call.1} parent=1 // pred_fallthru
      _
    // Predicated region
    $region42: #{tpu_custom_call.1} parent=1 // pred_check
      _
    $region43: #{tpu_custom_call.1} parent=1 // pred_check_branch
      %2896 = sbr.rel (0) target = $region45
    $region44: #{tpu_custom_call.1} parent=1 // pred_region
      %2897 = dma.done [#allocation4], 256
    $region45: #{tpu_custom_call.1} parent=1 // pred_fallthru
      _
    %2898 = vsyncpa [#allocation4], 1

</llo_original>
